<compile_context>
chip_gen: v7x
topology: tpu7x:2x2x1
jax: 0.10.0
libtpu: 0.0.40
codegen_flags: <defaults>
</compile_context>

<pallas_src>
import functools

import jax
import jax.numpy as jnp
from jax.experimental import pallas as pl
from jax.experimental.pallas import tpu as pltpu


# ----------------------------------------------------------------------------
# Fused encoder kernel: embedding gather + input projection + bi-GRU + fc/tanh.
# ----------------------------------------------------------------------------
def _encoder_kernel(ids_ref,                       # SMEM (S*B,) int32 (scalar prefetch)
                    table_ref, wx_ref, bx_ref, wh_ref, bh_ref, wfc_ref, bfc_ref,
                    *refs, T_c, B, H, n_chunks, fused_out):
    if fused_out:
        out_ref, hid_ref, emb_scr, h_scr = refs
    else:
        out_f_ref, out_b_ref, hid_ref, emb_scr, h_scr = refs

    c = pl.program_id(0)
    rows = T_c * B
    H3 = 3 * H
    f32 = jnp.float32

    @pl.when(c == 0)
    def _init():
        h_scr[...] = jnp.zeros_like(h_scr)

    # ---- exact embedding gather: ids in SMEM, table VMEM-resident -----------
    # Forward chunk rows -> emb_scr[:rows]; when the backward direction's chunk
    # is a different time window (multi-chunk case) gather it into the second
    # half of the scratch.
    base_f = c * rows
    for k in range(rows):
        tok = ids_ref[base_f + k]
        emb_scr[pl.ds(k, 1), :] = table_ref[pl.ds(tok, 1), :]
    if not fused_out:
        base_b = (n_chunks - 1 - c) * rows
        for k in range(rows):
            tok = ids_ref[base_b + k]
            emb_scr[pl.ds(rows + k, 1), :] = table_ref[pl.ds(tok, 1), :]

    # ---- fused input projection for BOTH directions: one matmul per chunk ---
    # columns [0:3H] = forward gates (r, z, n), [3H:6H] = backward gates.
    xg = jnp.dot(emb_scr[...], wx_ref[...],
                 preferred_element_type=f32) + bx_ref[...]
    if fused_out:
        xg_f = xg                       # single chunk: both directions share rows
        xg_b = xg
    else:
        xg_f = xg[:rows]
        xg_b = xg[rows:]

    wh = wh_ref[...]                    # (2H, 6H) block-diagonal hidden weight
    bh = bh_ref[...]

    # ---- fully-unrolled serial bi-GRU recurrence over the chunk -------------
    for i in range(T_c):
        h_cat = h_scr[...]                               # (B, 2H) = [h_f | h_b]
        # Both directions' hidden->hidden matmuls in ONE MXU push.
        gh = jnp.dot(h_cat, wh, preferred_element_type=f32) + bh    # (B, 6H)

        x_f = xg_f[i * B:(i + 1) * B, :]                 # fwd time  c*T_c + i
        x_b = xg_b[(T_c - 1 - i) * B:(T_c - i) * B, :]   # bwd time  S-1-(c*T_c+i)

        r_f = jax.nn.sigmoid(x_f[:, 0:H] + gh[:, 0:H])
        z_f = jax.nn.sigmoid(x_f[:, H:2 * H] + gh[:, H:2 * H])
        n_f = jnp.tanh(x_f[:, 2 * H:H3] + r_f * gh[:, 2 * H:H3])
        h_f = (1.0 - z_f) * n_f + z_f * h_cat[:, 0:H]

        r_b = jax.nn.sigmoid(x_b[:, H3:H3 + H] + gh[:, H3:H3 + H])
        z_b = jax.nn.sigmoid(x_b[:, H3 + H:H3 + 2 * H] + gh[:, H3 + H:H3 + 2 * H])
        n_b = jnp.tanh(x_b[:, H3 + 2 * H:] + r_b * gh[:, H3 + 2 * H:])
        h_b = (1.0 - z_b) * n_b + z_b * h_cat[:, H:]

        h_scr[:, 0:H] = h_f
        h_scr[:, H:] = h_b

        if fused_out:
            out_ref[i, :, 0:H] = h_f
            out_ref[T_c - 1 - i, :, H:] = h_b
        else:
            out_f_ref[i] = h_f
            out_b_ref[T_c - 1 - i] = h_b

    # ---- final Encoder fc + tanh, fused into the last grid step -------------
    @pl.when(c == n_chunks - 1)
    def _final():
        hid_ref[...] = jnp.tanh(
            jnp.dot(h_scr[...], wfc_ref[...], preferred_element_type=f32)
            + bfc_ref[...])


def _pick_time_chunk(S, max_chunk=32):
    """Largest time chunk <= max_chunk dividing S (whole sequence if small)."""
    if S <= max_chunk:
        return S
    for t in range(max_chunk, 0, -1):
        if S % t == 0:
            return t
    return S


# ----------------------------------------------------------------------------
# Wrapper
# ----------------------------------------------------------------------------
def encoder_forward(src, params):
    """src: (S, B) int token ids. Returns (outputs (S, B, 2H), hidden (B, D))."""
    S, B = src.shape
    f32 = jnp.float32
    table = params["embedding"].astype(f32)              # (V, E)
    V, E = table.shape
    H = params["Whh_f"].shape[1]                          # Whh: (3H, H)
    H3, H6 = 3 * H, 6 * H
    D = params["W_fc"].shape[0]

    T_c = _pick_time_chunk(S)
    n_chunks = S // T_c
    fused_out = (n_chunks == 1)
    rows = T_c * B
    emb_rows = rows if fused_out else 2 * rows

    ids = src.reshape(-1).astype(jnp.int32)               # (S*B,) -> SMEM prefetch

    # One-time weight fusions (init-style transforms, outside the hot loop):
    #   W_x: both directions' input projections in one (E, 6H) matrix.
    #   W_h: block-diagonal (2H, 6H) so one matmul advances both directions.
    W_x = jnp.concatenate([params["Wih_f"].T, params["Wih_b"].T], axis=1)
    b_x = jnp.concatenate([params["bih_f"], params["bih_b"]]).reshape(1, H6)
    W_h = jnp.zeros((2 * H, H6), f32)
    W_h = W_h.at[:H, :H3].set(params["Whh_f"].T)
    W_h = W_h.at[H:, H3:].set(params["Whh_b"].T)
    b_h = jnp.concatenate([params["bhh_f"], params["bhh_b"]]).reshape(1, H6)
    W_fc = params["W_fc"].T.astype(f32)                    # (2H, D), [h_f | h_b]
    b_fc = params["b_fc"].reshape(1, D)

    kernel = functools.partial(_encoder_kernel, T_c=T_c, B=B, H=H,
                               n_chunks=n_chunks, fused_out=fused_out)

    weight_specs = [
        pl.BlockSpec((V, E), lambda c, sids: (0, 0)),
        pl.BlockSpec((E, H6), lambda c, sids: (0, 0)),
        pl.BlockSpec((1, H6), lambda c, sids: (0, 0)),
        pl.BlockSpec((2 * H, H6), lambda c, sids: (0, 0)),
        pl.BlockSpec((1, H6), lambda c, sids: (0, 0)),
        pl.BlockSpec((2 * H, D), lambda c, sids: (0, 0)),
        pl.BlockSpec((1, D), lambda c, sids: (0, 0)),
    ]

    if fused_out:
        out_shape = (jax.ShapeDtypeStruct((S, B, 2 * H), f32),
                     jax.ShapeDtypeStruct((B, D), f32))
        out_specs = (pl.BlockSpec((S, B, 2 * H), lambda c, sids: (0, 0, 0)),
                     pl.BlockSpec((B, D), lambda c, sids: (0, 0)))
    else:
        out_shape = (jax.ShapeDtypeStruct((S, B, H), f32),
                     jax.ShapeDtypeStruct((S, B, H), f32),
                     jax.ShapeDtypeStruct((B, D), f32))
        out_specs = (
            pl.BlockSpec((T_c, B, H), lambda c, sids: (c, 0, 0)),
            pl.BlockSpec((T_c, B, H), lambda c, sids: (n_chunks - 1 - c, 0, 0)),
            pl.BlockSpec((B, D), lambda c, sids: (0, 0)))

    cost = pl.CostEstimate(
        flops=2 * S * B * (E * H6 + 2 * H * H6) + 2 * B * 2 * H * D,
        transcendentals=6 * S * B * H + B * D,
        bytes_accessed=4 * (S * B + V * E + E * H6 + 2 * H * H6 + 2 * H * D
                            + 2 * H6 + D + S * B * 2 * H + B * D))

    results = pl.pallas_call(
        kernel,
        out_shape=out_shape,
        grid_spec=pltpu.PrefetchScalarGridSpec(
            num_scalar_prefetch=1,
            grid=(n_chunks,),
            in_specs=weight_specs,
            out_specs=out_specs,
            scratch_shapes=[pltpu.VMEM((emb_rows, E), f32),
                            pltpu.VMEM((B, 2 * H), f32)]),
        compiler_params=pltpu.CompilerParams(
            dimension_semantics=("arbitrary",),    # serial recurrence over time
            vmem_limit_bytes=32 * 1024 * 1024),
        cost_estimate=cost,
    )(ids, table, W_x, b_x, W_h, b_h, W_fc, b_fc)

    if fused_out:
        outputs, hidden = results
    else:
        # TODO(synk): the multi-chunk path still concatenates the direction
        # halves in the wrapper; a (direction, chunk) grid writing one (S,B,2H)
        # array would remove this extra HBM pass.
        out_f, out_b, hidden = results
        outputs = jnp.concatenate([out_f, out_b], axis=-1)
    return outputs, hidden


# ----------------------------------------------------------------------------
# Pure-JAX reference (mirrors the PyTorch forward in eval mode).
# ----------------------------------------------------------------------------
def _gru_cell_ref(x, h, Wih, Whh, bih, bhh):
    H = h.shape[1]
    gi = x @ Wih.T + bih
    gh = h @ Whh.T + bhh
    r = jax.nn.sigmoid(gi[:, :H] + gh[:, :H])
    z = jax.nn.sigmoid(gi[:, H:2 * H] + gh[:, H:2 * H])
    n = jnp.tanh(gi[:, 2 * H:] + r * gh[:, 2 * H:])
    return (1.0 - z) * n + z * h


def encoder_reference(src, params):
    emb = params["embedding"][src]                  # (S, B, E)
    S, B, _ = emb.shape
    H = params["Whh_f"].shape[1]
    h_f = jnp.zeros((B, H), jnp.float32)
    h_b = jnp.zeros((B, H), jnp.float32)
    outs_f = []
    outs_b = [None] * S
    for t in range(S):
        h_f = _gru_cell_ref(emb[t], h_f, params["Wih_f"], params["Whh_f"],
                            params["bih_f"], params["bhh_f"])
        outs_f.append(h_f)
    for t in range(S - 1, -1, -1):
        h_b = _gru_cell_ref(emb[t], h_b, params["Wih_b"], params["Whh_b"],
                            params["bih_b"], params["bhh_b"])
        outs_b[t] = h_b
    outputs = jnp.concatenate([jnp.stack(outs_f), jnp.stack(outs_b)], axis=-1)
    hidden = jnp.tanh(jnp.concatenate([h_f, h_b], axis=1) @ params["W_fc"].T
                      + params["b_fc"])
    return outputs, hidden


if __name__ == "__main__":
    input_dim = 64      # vocab
    emb_dim = 32
    enc_hid_dim = 16
    dec_hid_dim = 32
    S, B = 8, 2

    V, E, H, D = input_dim, emb_dim, enc_hid_dim, dec_hid_dim
    key = jax.random.PRNGKey(0)
    keys = jax.random.split(key, 12)
    k_gru = 1.0 / (H ** 0.5)
    k_fc = 1.0 / ((2 * H) ** 0.5)

    def u(kk, shape, bound):
        return jax.random.uniform(kk, shape, jnp.float32, -bound, bound)

    params = {
        "embedding": jax.random.normal(keys[0], (V, E), jnp.float32),
        "Wih_f": u(keys[1], (3 * H, E), k_gru), "Whh_f": u(keys[2], (3 * H, H), k_gru),
        "bih_f": u(keys[3], (3 * H,), k_gru),   "bhh_f": u(keys[4], (3 * H,), k_gru),
        "Wih_b": u(keys[5], (3 * H, E), k_gru), "Whh_b": u(keys[6], (3 * H, H), k_gru),
        "bih_b": u(keys[7], (3 * H,), k_gru),   "bhh_b": u(keys[8], (3 * H,), k_gru),
        "W_fc": u(keys[9], (D, 2 * H), k_fc),   "b_fc": u(keys[10], (D,), k_fc),
    }
    src = jax.random.randint(keys[11], (S, B), 0, V, dtype=jnp.int32)

    outputs, hidden = encoder_forward(src, params)
    outputs, hidden = jax.block_until_ready((outputs, hidden))

    ref_outputs, ref_hidden = encoder_reference(src, params)
    assert outputs.shape == (S, B, 2 * H), outputs.shape
    assert hidden.shape == (B, D), hidden.shape
    assert jnp.allclose(outputs, ref_outputs, atol=1e-4, rtol=1e-4), (
        jnp.max(jnp.abs(outputs - ref_outputs)))
    assert jnp.allclose(hidden, ref_hidden, atol=1e-4, rtol=1e-4), (
        jnp.max(jnp.abs(hidden - ref_hidden)))

    print("KERNEL_OK")
</pallas_src>

<mosaic_0001>
module attributes {stable_mosaic.version = 11 : i64} {
  func.func @_encoder_kernel(%arg0: i32, %arg1: memref<16xi32, #tpu.memory_space<smem>>, %arg2: memref<64x32xf32, #tpu.memory_space<vmem>>, %arg3: memref<32x96xf32, #tpu.memory_space<vmem>>, %arg4: memref<1x96xf32, #tpu.memory_space<vmem>>, %arg5: memref<32x96xf32, #tpu.memory_space<vmem>>, %arg6: memref<1x96xf32, #tpu.memory_space<vmem>>, %arg7: memref<32x32xf32, #tpu.memory_space<vmem>>, %arg8: memref<1x32xf32, #tpu.memory_space<vmem>>, %arg9: memref<8x2x32xf32, #tpu.memory_space<vmem>>, %arg10: memref<2x32xf32, #tpu.memory_space<vmem>>, %arg11: memref<16x32xf32, #tpu.memory_space<vmem>>, %arg12: memref<2x32xf32, #tpu.memory_space<vmem>>) attributes {dimension_semantics = [#tpu.dimension_semantics<arbitrary>], iteration_bounds = array<i64: 1>, scalar_prefetch = 1 : i64, scratch_operands = 2 : i64, tpu.core_type = #tpu.core_type<tc>, window_params = [{pipeline_mode = #tpu.pipeline_mode<synchronous>, transform_indices = @transform_0, window_bounds = array<i64: 64, 32>}, {pipeline_mode = #tpu.pipeline_mode<synchronous>, transform_indices = @transform_1, window_bounds = array<i64: 32, 96>}, {pipeline_mode = #tpu.pipeline_mode<synchronous>, transform_indices = @transform_2, window_bounds = array<i64: 1, 96>}, {pipeline_mode = #tpu.pipeline_mode<synchronous>, transform_indices = @transform_3, window_bounds = array<i64: 32, 96>}, {pipeline_mode = #tpu.pipeline_mode<synchronous>, transform_indices = @transform_4, window_bounds = array<i64: 1, 96>}, {pipeline_mode = #tpu.pipeline_mode<synchronous>, transform_indices = @transform_5, window_bounds = array<i64: 32, 32>}, {pipeline_mode = #tpu.pipeline_mode<synchronous>, transform_indices = @transform_6, window_bounds = array<i64: 1, 32>}, {pipeline_mode = #tpu.pipeline_mode<synchronous>, transform_indices = @transform_7, window_bounds = array<i64: 8, 2, 32>}, {pipeline_mode = #tpu.pipeline_mode<synchronous>, transform_indices = @transform_8, window_bounds = array<i64: 2, 32>}]} {
    %c0_i32 = arith.constant 0 : i32
    %0 = arith.cmpi eq, %arg0, %c0_i32 : i32
    %1 = arith.extui %0 : i1 to i32
    %c0_i32_0 = arith.constant 0 : i32
    %2 = arith.cmpi ne, %1, %c0_i32_0 : i32
    scf.if %2 {
      %cst_197 = arith.constant 0.000000e+00 : f32
      %655 = vector.broadcast %cst_197 : f32 to vector<2x32xf32>
      %c0_198 = arith.constant 0 : index
      %c0_199 = arith.constant 0 : index
      %656 = vector.load %arg12[%c0_198, %c0_199] : memref<2x32xf32, #tpu.memory_space<vmem>>, vector<2x32xf32>
      tpu.vector_store %arg12[%c0_198, %c0_199], %655 {strides = array<i32>} : memref<2x32xf32, #tpu.memory_space<vmem>>, vector<2x32xf32>,
    } else {
    }
    %c16_i32 = arith.constant 16 : i32
    %3 = arith.muli %arg0, %c16_i32 : i32
    %c0_i32_1 = arith.constant 0 : i32
    %4 = arith.addi %3, %c0_i32_1 : i32
    %5 = arith.index_cast %4 : i32 to index
    %6 = memref.load %arg1[%5] : memref<16xi32, #tpu.memory_space<smem>>
    %7 = arith.index_cast %6 : i32 to index
    %c0 = arith.constant 0 : index
    %8 = vector.load %arg2[%7, %c0] : memref<64x32xf32, #tpu.memory_space<vmem>>, vector<1x32xf32>
    %c0_2 = arith.constant 0 : index
    %c0_3 = arith.constant 0 : index
    %9 = vector.load %arg11[%c0_2, %c0_3] : memref<16x32xf32, #tpu.memory_space<vmem>>, vector<1x32xf32>
    tpu.vector_store %arg11[%c0_2, %c0_3], %8 {strides = array<i32>} : memref<16x32xf32, #tpu.memory_space<vmem>>, vector<1x32xf32>,
    %c1_i32 = arith.constant 1 : i32
    %10 = arith.addi %3, %c1_i32 : i32
    %11 = arith.index_cast %10 : i32 to index
    %12 = memref.load %arg1[%11] : memref<16xi32, #tpu.memory_space<smem>>
    %13 = arith.index_cast %12 : i32 to index
    %c0_4 = arith.constant 0 : index
    %14 = vector.load %arg2[%13, %c0_4] : memref<64x32xf32, #tpu.memory_space<vmem>>, vector<1x32xf32>
    %c1 = arith.constant 1 : index
    %c0_5 = arith.constant 0 : index
    %15 = vector.load %arg11[%c1, %c0_5] : memref<16x32xf32, #tpu.memory_space<vmem>>, vector<1x32xf32>
    tpu.vector_store %arg11[%c1, %c0_5], %14 {strides = array<i32>} : memref<16x32xf32, #tpu.memory_space<vmem>>, vector<1x32xf32>,
    %c2_i32 = arith.constant 2 : i32
    %16 = arith.addi %3, %c2_i32 : i32
    %17 = arith.index_cast %16 : i32 to index
    %18 = memref.load %arg1[%17] : memref<16xi32, #tpu.memory_space<smem>>
    %19 = arith.index_cast %18 : i32 to index
    %c0_6 = arith.constant 0 : index
    %20 = vector.load %arg2[%19, %c0_6] : memref<64x32xf32, #tpu.memory_space<vmem>>, vector<1x32xf32>
    %c2 = arith.constant 2 : index
    %c0_7 = arith.constant 0 : index
    %21 = vector.load %arg11[%c2, %c0_7] : memref<16x32xf32, #tpu.memory_space<vmem>>, vector<1x32xf32>
    tpu.vector_store %arg11[%c2, %c0_7], %20 {strides = array<i32>} : memref<16x32xf32, #tpu.memory_space<vmem>>, vector<1x32xf32>,
    %c3_i32 = arith.constant 3 : i32
    %22 = arith.addi %3, %c3_i32 : i32
    %23 = arith.index_cast %22 : i32 to index
    %24 = memref.load %arg1[%23] : memref<16xi32, #tpu.memory_space<smem>>
    %25 = arith.index_cast %24 : i32 to index
    %c0_8 = arith.constant 0 : index
    %26 = vector.load %arg2[%25, %c0_8] : memref<64x32xf32, #tpu.memory_space<vmem>>, vector<1x32xf32>
    %c3 = arith.constant 3 : index
    %c0_9 = arith.constant 0 : index
    %27 = vector.load %arg11[%c3, %c0_9] : memref<16x32xf32, #tpu.memory_space<vmem>>, vector<1x32xf32>
    tpu.vector_store %arg11[%c3, %c0_9], %26 {strides = array<i32>} : memref<16x32xf32, #tpu.memory_space<vmem>>, vector<1x32xf32>,
    %c4_i32 = arith.constant 4 : i32
    %28 = arith.addi %3, %c4_i32 : i32
    %29 = arith.index_cast %28 : i32 to index
    %30 = memref.load %arg1[%29] : memref<16xi32, #tpu.memory_space<smem>>
    %31 = arith.index_cast %30 : i32 to index
    %c0_10 = arith.constant 0 : index
    %32 = vector.load %arg2[%31, %c0_10] : memref<64x32xf32, #tpu.memory_space<vmem>>, vector<1x32xf32>
    %c4 = arith.constant 4 : index
    %c0_11 = arith.constant 0 : index
    %33 = vector.load %arg11[%c4, %c0_11] : memref<16x32xf32, #tpu.memory_space<vmem>>, vector<1x32xf32>
    tpu.vector_store %arg11[%c4, %c0_11], %32 {strides = array<i32>} : memref<16x32xf32, #tpu.memory_space<vmem>>, vector<1x32xf32>,
    %c5_i32 = arith.constant 5 : i32
    %34 = arith.addi %3, %c5_i32 : i32
    %35 = arith.index_cast %34 : i32 to index
    %36 = memref.load %arg1[%35] : memref<16xi32, #tpu.memory_space<smem>>
    %37 = arith.index_cast %36 : i32 to index
    %c0_12 = arith.constant 0 : index
    %38 = vector.load %arg2[%37, %c0_12] : memref<64x32xf32, #tpu.memory_space<vmem>>, vector<1x32xf32>
    %c5 = arith.constant 5 : index
    %c0_13 = arith.constant 0 : index
    %39 = vector.load %arg11[%c5, %c0_13] : memref<16x32xf32, #tpu.memory_space<vmem>>, vector<1x32xf32>
    tpu.vector_store %arg11[%c5, %c0_13], %38 {strides = array<i32>} : memref<16x32xf32, #tpu.memory_space<vmem>>, vector<1x32xf32>,
    %c6_i32 = arith.constant 6 : i32
    %40 = arith.addi %3, %c6_i32 : i32
    %41 = arith.index_cast %40 : i32 to index
    %42 = memref.load %arg1[%41] : memref<16xi32, #tpu.memory_space<smem>>
    %43 = arith.index_cast %42 : i32 to index
    %c0_14 = arith.constant 0 : index
    %44 = vector.load %arg2[%43, %c0_14] : memref<64x32xf32, #tpu.memory_space<vmem>>, vector<1x32xf32>
    %c6 = arith.constant 6 : index
    %c0_15 = arith.constant 0 : index
    %45 = vector.load %arg11[%c6, %c0_15] : memref<16x32xf32, #tpu.memory_space<vmem>>, vector<1x32xf32>
    tpu.vector_store %arg11[%c6, %c0_15], %44 {strides = array<i32>} : memref<16x32xf32, #tpu.memory_space<vmem>>, vector<1x32xf32>,
    %c7_i32 = arith.constant 7 : i32
    %46 = arith.addi %3, %c7_i32 : i32
    %47 = arith.index_cast %46 : i32 to index
    %48 = memref.load %arg1[%47] : memref<16xi32, #tpu.memory_space<smem>>
    %49 = arith.index_cast %48 : i32 to index
    %c0_16 = arith.constant 0 : index
    %50 = vector.load %arg2[%49, %c0_16] : memref<64x32xf32, #tpu.memory_space<vmem>>, vector<1x32xf32>
    %c7 = arith.constant 7 : index
    %c0_17 = arith.constant 0 : index
    %51 = vector.load %arg11[%c7, %c0_17] : memref<16x32xf32, #tpu.memory_space<vmem>>, vector<1x32xf32>
    tpu.vector_store %arg11[%c7, %c0_17], %50 {strides = array<i32>} : memref<16x32xf32, #tpu.memory_space<vmem>>, vector<1x32xf32>,
    %c8_i32 = arith.constant 8 : i32
    %52 = arith.addi %3, %c8_i32 : i32
    %53 = arith.index_cast %52 : i32 to index
    %54 = memref.load %arg1[%53] : memref<16xi32, #tpu.memory_space<smem>>
    %55 = arith.index_cast %54 : i32 to index
    %c0_18 = arith.constant 0 : index
    %56 = vector.load %arg2[%55, %c0_18] : memref<64x32xf32, #tpu.memory_space<vmem>>, vector<1x32xf32>
    %c8 = arith.constant 8 : index
    %c0_19 = arith.constant 0 : index
    %57 = vector.load %arg11[%c8, %c0_19] : memref<16x32xf32, #tpu.memory_space<vmem>>, vector<1x32xf32>
    tpu.vector_store %arg11[%c8, %c0_19], %56 {strides = array<i32>} : memref<16x32xf32, #tpu.memory_space<vmem>>, vector<1x32xf32>,
    %c9_i32 = arith.constant 9 : i32
    %58 = arith.addi %3, %c9_i32 : i32
    %59 = arith.index_cast %58 : i32 to index
    %60 = memref.load %arg1[%59] : memref<16xi32, #tpu.memory_space<smem>>
    %61 = arith.index_cast %60 : i32 to index
    %c0_20 = arith.constant 0 : index
    %62 = vector.load %arg2[%61, %c0_20] : memref<64x32xf32, #tpu.memory_space<vmem>>, vector<1x32xf32>
    %c9 = arith.constant 9 : index
    %c0_21 = arith.constant 0 : index
    %63 = vector.load %arg11[%c9, %c0_21] : memref<16x32xf32, #tpu.memory_space<vmem>>, vector<1x32xf32>
    tpu.vector_store %arg11[%c9, %c0_21], %62 {strides = array<i32>} : memref<16x32xf32, #tpu.memory_space<vmem>>, vector<1x32xf32>,
    %c10_i32 = arith.constant 10 : i32
    %64 = arith.addi %3, %c10_i32 : i32
    %65 = arith.index_cast %64 : i32 to index
    %66 = memref.load %arg1[%65] : memref<16xi32, #tpu.memory_space<smem>>
    %67 = arith.index_cast %66 : i32 to index
    %c0_22 = arith.constant 0 : index
    %68 = vector.load %arg2[%67, %c0_22] : memref<64x32xf32, #tpu.memory_space<vmem>>, vector<1x32xf32>
    %c10 = arith.constant 10 : index
    %c0_23 = arith.constant 0 : index
    %69 = vector.load %arg11[%c10, %c0_23] : memref<16x32xf32, #tpu.memory_space<vmem>>, vector<1x32xf32>
    tpu.vector_store %arg11[%c10, %c0_23], %68 {strides = array<i32>} : memref<16x32xf32, #tpu.memory_space<vmem>>, vector<1x32xf32>,
    %c11_i32 = arith.constant 11 : i32
    %70 = arith.addi %3, %c11_i32 : i32
    %71 = arith.index_cast %70 : i32 to index
    %72 = memref.load %arg1[%71] : memref<16xi32, #tpu.memory_space<smem>>
    %73 = arith.index_cast %72 : i32 to index
    %c0_24 = arith.constant 0 : index
    %74 = vector.load %arg2[%73, %c0_24] : memref<64x32xf32, #tpu.memory_space<vmem>>, vector<1x32xf32>
    %c11 = arith.constant 11 : index
    %c0_25 = arith.constant 0 : index
    %75 = vector.load %arg11[%c11, %c0_25] : memref<16x32xf32, #tpu.memory_space<vmem>>, vector<1x32xf32>
    tpu.vector_store %arg11[%c11, %c0_25], %74 {strides = array<i32>} : memref<16x32xf32, #tpu.memory_space<vmem>>, vector<1x32xf32>,
    %c12_i32 = arith.constant 12 : i32
    %76 = arith.addi %3, %c12_i32 : i32
    %77 = arith.index_cast %76 : i32 to index
    %78 = memref.load %arg1[%77] : memref<16xi32, #tpu.memory_space<smem>>
    %79 = arith.index_cast %78 : i32 to index
    %c0_26 = arith.constant 0 : index
    %80 = vector.load %arg2[%79, %c0_26] : memref<64x32xf32, #tpu.memory_space<vmem>>, vector<1x32xf32>
    %c12 = arith.constant 12 : index
    %c0_27 = arith.constant 0 : index
    %81 = vector.load %arg11[%c12, %c0_27] : memref<16x32xf32, #tpu.memory_space<vmem>>, vector<1x32xf32>
    tpu.vector_store %arg11[%c12, %c0_27], %80 {strides = array<i32>} : memref<16x32xf32, #tpu.memory_space<vmem>>, vector<1x32xf32>,
    %c13_i32 = arith.constant 13 : i32
    %82 = arith.addi %3, %c13_i32 : i32
    %83 = arith.index_cast %82 : i32 to index
    %84 = memref.load %arg1[%83] : memref<16xi32, #tpu.memory_space<smem>>
    %85 = arith.index_cast %84 : i32 to index
    %c0_28 = arith.constant 0 : index
    %86 = vector.load %arg2[%85, %c0_28] : memref<64x32xf32, #tpu.memory_space<vmem>>, vector<1x32xf32>
    %c13 = arith.constant 13 : index
    %c0_29 = arith.constant 0 : index
    %87 = vector.load %arg11[%c13, %c0_29] : memref<16x32xf32, #tpu.memory_space<vmem>>, vector<1x32xf32>
    tpu.vector_store %arg11[%c13, %c0_29], %86 {strides = array<i32>} : memref<16x32xf32, #tpu.memory_space<vmem>>, vector<1x32xf32>,
    %c14_i32 = arith.constant 14 : i32
    %88 = arith.addi %3, %c14_i32 : i32
    %89 = arith.index_cast %88 : i32 to index
    %90 = memref.load %arg1[%89] : memref<16xi32, #tpu.memory_space<smem>>
    %91 = arith.index_cast %90 : i32 to index
    %c0_30 = arith.constant 0 : index
    %92 = vector.load %arg2[%91, %c0_30] : memref<64x32xf32, #tpu.memory_space<vmem>>, vector<1x32xf32>
    %c14 = arith.constant 14 : index
    %c0_31 = arith.constant 0 : index
    %93 = vector.load %arg11[%c14, %c0_31] : memref<16x32xf32, #tpu.memory_space<vmem>>, vector<1x32xf32>
    tpu.vector_store %arg11[%c14, %c0_31], %92 {strides = array<i32>} : memref<16x32xf32, #tpu.memory_space<vmem>>, vector<1x32xf32>,
    %c15_i32 = arith.constant 15 : i32
    %94 = arith.addi %3, %c15_i32 : i32
    %95 = arith.index_cast %94 : i32 to index
    %96 = memref.load %arg1[%95] : memref<16xi32, #tpu.memory_space<smem>>
    %97 = arith.index_cast %96 : i32 to index
    %c0_32 = arith.constant 0 : index
    %98 = vector.load %arg2[%97, %c0_32] : memref<64x32xf32, #tpu.memory_space<vmem>>, vector<1x32xf32>
    %c15 = arith.constant 15 : index
    %c0_33 = arith.constant 0 : index
    %99 = vector.load %arg11[%c15, %c0_33] : memref<16x32xf32, #tpu.memory_space<vmem>>, vector<1x32xf32>
    tpu.vector_store %arg11[%c15, %c0_33], %98 {strides = array<i32>} : memref<16x32xf32, #tpu.memory_space<vmem>>, vector<1x32xf32>,
    %c0_34 = arith.constant 0 : index
    %c0_35 = arith.constant 0 : index
    %100 = vector.load %arg11[%c0_34, %c0_35] : memref<16x32xf32, #tpu.memory_space<vmem>>, vector<16x32xf32>
    %c0_36 = arith.constant 0 : index
    %c0_37 = arith.constant 0 : index
    %101 = vector.load %arg3[%c0_36, %c0_37] : memref<32x96xf32, #tpu.memory_space<vmem>>, vector<32x96xf32>
    %cst = arith.constant dense<0.000000e+00> : vector<16x96xf32>
    %102 = tpu.matmul %100, %101, %cst {dimension_numbers = #tpu.dot_dimension_numbers<[1], [0], [0], [1], [0, 0, 1, 1], [], []>} : vector<16x32xf32>, vector<32x96xf32>, vector<16x96xf32> -> vector<16x96xf32>
    %c0_38 = arith.constant 0 : index
    %c0_39 = arith.constant 0 : index
    %103 = vector.load %arg4[%c0_38, %c0_39] : memref<1x96xf32, #tpu.memory_space<vmem>>, vector<1x96xf32>
    %104 = vector.broadcast %103 : vector<1x96xf32> to vector<16x96xf32>
    %105 = arith.addf %102, %104 : vector<16x96xf32>
    %c0_40 = arith.constant 0 : index
    %c0_41 = arith.constant 0 : index
    %106 = vector.load %arg5[%c0_40, %c0_41] : memref<32x96xf32, #tpu.memory_space<vmem>>, vector<32x96xf32>
    %c0_42 = arith.constant 0 : index
    %c0_43 = arith.constant 0 : index
    %107 = vector.load %arg6[%c0_42, %c0_43] : memref<1x96xf32, #tpu.memory_space<vmem>>, vector<1x96xf32>
    %c0_44 = arith.constant 0 : index
    %c0_45 = arith.constant 0 : index
    %108 = vector.load %arg12[%c0_44, %c0_45] : memref<2x32xf32, #tpu.memory_space<vmem>>, vector<2x32xf32>
    %cst_46 = arith.constant dense<0.000000e+00> : vector<2x96xf32>
    %109 = tpu.matmul %108, %106, %cst_46 {dimension_numbers = #tpu.dot_dimension_numbers<[1], [0], [0], [1], [0, 0, 1, 1], [], []>} : vector<2x32xf32>, vector<32x96xf32>, vector<2x96xf32> -> vector<2x96xf32>
    %110 = vector.broadcast %107 : vector<1x96xf32> to vector<2x96xf32>
    %111 = arith.addf %109, %110 : vector<2x96xf32>
    %112 = vector.extract_strided_slice %105 {offsets = [0, 0], sizes = [2, 96], strides = [1, 1]} : vector<16x96xf32> to vector<2x96xf32>
    %113 = vector.extract_strided_slice %105 {offsets = [14, 0], sizes = [2, 96], strides = [1, 1]} : vector<16x96xf32> to vector<2x96xf32>
    %114 = vector.extract_strided_slice %112 {offsets = [0, 0], sizes = [2, 16], strides = [1, 1]} : vector<2x96xf32> to vector<2x16xf32>
    %115 = vector.extract_strided_slice %111 {offsets = [0, 0], sizes = [2, 16], strides = [1, 1]} : vector<2x96xf32> to vector<2x16xf32>
    %116 = arith.addf %114, %115 : vector<2x16xf32>
    %117 = arith.negf %116 : vector<2x16xf32>
    %118 = math.exp %117 : vector<2x16xf32>
    %cst_47 = arith.constant 1.000000e+00 : f32
    %119 = vector.broadcast %cst_47 : f32 to vector<2x16xf32>
    %120 = arith.addf %119, %118 : vector<2x16xf32>
    %121 = arith.divf %119, %120 : vector<2x16xf32>
    %122 = vector.extract_strided_slice %112 {offsets = [0, 16], sizes = [2, 16], strides = [1, 1]} : vector<2x96xf32> to vector<2x16xf32>
    %123 = vector.extract_strided_slice %111 {offsets = [0, 16], sizes = [2, 16], strides = [1, 1]} : vector<2x96xf32> to vector<2x16xf32>
    %124 = arith.addf %122, %123 : vector<2x16xf32>
    %125 = arith.negf %124 : vector<2x16xf32>
    %126 = math.exp %125 : vector<2x16xf32>
    %cst_48 = arith.constant 1.000000e+00 : f32
    %127 = vector.broadcast %cst_48 : f32 to vector<2x16xf32>
    %128 = arith.addf %127, %126 : vector<2x16xf32>
    %129 = arith.divf %127, %128 : vector<2x16xf32>
    %130 = vector.extract_strided_slice %112 {offsets = [0, 32], sizes = [2, 16], strides = [1, 1]} : vector<2x96xf32> to vector<2x16xf32>
    %131 = vector.extract_strided_slice %111 {offsets = [0, 32], sizes = [2, 16], strides = [1, 1]} : vector<2x96xf32> to vector<2x16xf32>
    %132 = arith.mulf %121, %131 : vector<2x16xf32>
    %133 = arith.addf %130, %132 : vector<2x16xf32>
    %134 = math.tanh %133 : vector<2x16xf32>
    %cst_49 = arith.constant 1.000000e+00 : f32
    %135 = vector.broadcast %cst_49 : f32 to vector<2x16xf32>
    %136 = arith.subf %135, %129 : vector<2x16xf32>
    %137 = arith.mulf %136, %134 : vector<2x16xf32>
    %138 = vector.extract_strided_slice %108 {offsets = [0, 0], sizes = [2, 16], strides = [1, 1]} : vector<2x32xf32> to vector<2x16xf32>
    %139 = arith.mulf %129, %138 : vector<2x16xf32>
    %140 = arith.addf %137, %139 : vector<2x16xf32>
    %141 = vector.extract_strided_slice %113 {offsets = [0, 48], sizes = [2, 16], strides = [1, 1]} : vector<2x96xf32> to vector<2x16xf32>
    %142 = vector.extract_strided_slice %111 {offsets = [0, 48], sizes = [2, 16], strides = [1, 1]} : vector<2x96xf32> to vector<2x16xf32>
    %143 = arith.addf %141, %142 : vector<2x16xf32>
    %144 = arith.negf %143 : vector<2x16xf32>
    %145 = math.exp %144 : vector<2x16xf32>
    %cst_50 = arith.constant 1.000000e+00 : f32
    %146 = vector.broadcast %cst_50 : f32 to vector<2x16xf32>
    %147 = arith.addf %146, %145 : vector<2x16xf32>
    %148 = arith.divf %146, %147 : vector<2x16xf32>
    %149 = vector.extract_strided_slice %113 {offsets = [0, 64], sizes = [2, 16], strides = [1, 1]} : vector<2x96xf32> to vector<2x16xf32>
    %150 = vector.extract_strided_slice %111 {offsets = [0, 64], sizes = [2, 16], strides = [1, 1]} : vector<2x96xf32> to vector<2x16xf32>
    %151 = arith.addf %149, %150 : vector<2x16xf32>
    %152 = arith.negf %151 : vector<2x16xf32>
    %153 = math.exp %152 : vector<2x16xf32>
    %cst_51 = arith.constant 1.000000e+00 : f32
    %154 = vector.broadcast %cst_51 : f32 to vector<2x16xf32>
    %155 = arith.addf %154, %153 : vector<2x16xf32>
    %156 = arith.divf %154, %155 : vector<2x16xf32>
    %157 = vector.extract_strided_slice %113 {offsets = [0, 80], sizes = [2, 16], strides = [1, 1]} : vector<2x96xf32> to vector<2x16xf32>
    %158 = vector.extract_strided_slice %111 {offsets = [0, 80], sizes = [2, 16], strides = [1, 1]} : vector<2x96xf32> to vector<2x16xf32>
    %159 = arith.mulf %148, %158 : vector<2x16xf32>
    %160 = arith.addf %157, %159 : vector<2x16xf32>
    %161 = math.tanh %160 : vector<2x16xf32>
    %cst_52 = arith.constant 1.000000e+00 : f32
    %162 = vector.broadcast %cst_52 : f32 to vector<2x16xf32>
    %163 = arith.subf %162, %156 : vector<2x16xf32>
    %164 = arith.mulf %163, %161 : vector<2x16xf32>
    %165 = vector.extract_strided_slice %108 {offsets = [0, 16], sizes = [2, 16], strides = [1, 1]} : vector<2x32xf32> to vector<2x16xf32>
    %166 = arith.mulf %156, %165 : vector<2x16xf32>
    %167 = arith.addf %164, %166 : vector<2x16xf32>
    %c0_53 = arith.constant 0 : index
    %c0_54 = arith.constant 0 : index
    %168 = vector.load %arg12[%c0_53, %c0_54] : memref<2x32xf32, #tpu.memory_space<vmem>>, vector<2x16xf32>
    tpu.vector_store %arg12[%c0_53, %c0_54], %140 {strides = array<i32>} : memref<2x32xf32, #tpu.memory_space<vmem>>, vector<2x16xf32>,
    %c0_55 = arith.constant 0 : index
    %c16 = arith.constant 16 : index
    %169 = vector.load %arg12[%c0_55, %c16] : memref<2x32xf32, #tpu.memory_space<vmem>>, vector<2x16xf32>
    tpu.vector_store %arg12[%c0_55, %c16], %167 {strides = array<i32>} : memref<2x32xf32, #tpu.memory_space<vmem>>, vector<2x16xf32>,
    %c0_56 = arith.constant 0 : index
    %c0_57 = arith.constant 0 : index
    %c0_58 = arith.constant 0 : index
    %170 = vector.load %arg9[%c0_56, %c0_57, %c0_58] : memref<8x2x32xf32, #tpu.memory_space<vmem>>, vector<1x2x16xf32>
    %171 = vector.shape_cast %170 : vector<1x2x16xf32> to vector<2x16xf32>
    %172 = vector.shape_cast %140 : vector<2x16xf32> to vector<1x2x16xf32>
    tpu.vector_store %arg9[%c0_56, %c0_57, %c0_58], %172 {strides = array<i32>} : memref<8x2x32xf32, #tpu.memory_space<vmem>>, vector<1x2x16xf32>,
    %c7_59 = arith.constant 7 : index
    %c0_60 = arith.constant 0 : index
    %c16_61 = arith.constant 16 : index
    %173 = vector.load %arg9[%c7_59, %c0_60, %c16_61] : memref<8x2x32xf32, #tpu.memory_space<vmem>>, vector<1x2x16xf32>
    %174 = vector.shape_cast %173 : vector<1x2x16xf32> to vector<2x16xf32>
    %175 = vector.shape_cast %167 : vector<2x16xf32> to vector<1x2x16xf32>
    tpu.vector_store %arg9[%c7_59, %c0_60, %c16_61], %175 {strides = array<i32>} : memref<8x2x32xf32, #tpu.memory_space<vmem>>, vector<1x2x16xf32>,
    %c0_62 = arith.constant 0 : index
    %c0_63 = arith.constant 0 : index
    %176 = vector.load %arg12[%c0_62, %c0_63] : memref<2x32xf32, #tpu.memory_space<vmem>>, vector<2x32xf32>
    %cst_64 = arith.constant dense<0.000000e+00> : vector<2x96xf32>
    %177 = tpu.matmul %176, %106, %cst_64 {dimension_numbers = #tpu.dot_dimension_numbers<[1], [0], [0], [1], [0, 0, 1, 1], [], []>} : vector<2x32xf32>, vector<32x96xf32>, vector<2x96xf32> -> vector<2x96xf32>
    %178 = vector.broadcast %107 : vector<1x96xf32> to vector<2x96xf32>
    %179 = arith.addf %177, %178 : vector<2x96xf32>
    %180 = vector.extract_strided_slice %105 {offsets = [2, 0], sizes = [2, 96], strides = [1, 1]} : vector<16x96xf32> to vector<2x96xf32>
    %181 = vector.extract_strided_slice %105 {offsets = [12, 0], sizes = [2, 96], strides = [1, 1]} : vector<16x96xf32> to vector<2x96xf32>
    %182 = vector.extract_strided_slice %180 {offsets = [0, 0], sizes = [2, 16], strides = [1, 1]} : vector<2x96xf32> to vector<2x16xf32>
    %183 = vector.extract_strided_slice %179 {offsets = [0, 0], sizes = [2, 16], strides = [1, 1]} : vector<2x96xf32> to vector<2x16xf32>
    %184 = arith.addf %182, %183 : vector<2x16xf32>
    %185 = arith.negf %184 : vector<2x16xf32>
    %186 = math.exp %185 : vector<2x16xf32>
    %cst_65 = arith.constant 1.000000e+00 : f32
    %187 = vector.broadcast %cst_65 : f32 to vector<2x16xf32>
    %188 = arith.addf %187, %186 : vector<2x16xf32>
    %189 = arith.divf %187, %188 : vector<2x16xf32>
    %190 = vector.extract_strided_slice %180 {offsets = [0, 16], sizes = [2, 16], strides = [1, 1]} : vector<2x96xf32> to vector<2x16xf32>
    %191 = vector.extract_strided_slice %179 {offsets = [0, 16], sizes = [2, 16], strides = [1, 1]} : vector<2x96xf32> to vector<2x16xf32>
    %192 = arith.addf %190, %191 : vector<2x16xf32>
    %193 = arith.negf %192 : vector<2x16xf32>
    %194 = math.exp %193 : vector<2x16xf32>
    %cst_66 = arith.constant 1.000000e+00 : f32
    %195 = vector.broadcast %cst_66 : f32 to vector<2x16xf32>
    %196 = arith.addf %195, %194 : vector<2x16xf32>
    %197 = arith.divf %195, %196 : vector<2x16xf32>
    %198 = vector.extract_strided_slice %180 {offsets = [0, 32], sizes = [2, 16], strides = [1, 1]} : vector<2x96xf32> to vector<2x16xf32>
    %199 = vector.extract_strided_slice %179 {offsets = [0, 32], sizes = [2, 16], strides = [1, 1]} : vector<2x96xf32> to vector<2x16xf32>
    %200 = arith.mulf %189, %199 : vector<2x16xf32>
    %201 = arith.addf %198, %200 : vector<2x16xf32>
    %202 = math.tanh %201 : vector<2x16xf32>
    %cst_67 = arith.constant 1.000000e+00 : f32
    %203 = vector.broadcast %cst_67 : f32 to vector<2x16xf32>
    %204 = arith.subf %203, %197 : vector<2x16xf32>
    %205 = arith.mulf %204, %202 : vector<2x16xf32>
    %206 = vector.extract_strided_slice %176 {offsets = [0, 0], sizes = [2, 16], strides = [1, 1]} : vector<2x32xf32> to vector<2x16xf32>
    %207 = arith.mulf %197, %206 : vector<2x16xf32>
    %208 = arith.addf %205, %207 : vector<2x16xf32>
    %209 = vector.extract_strided_slice %181 {offsets = [0, 48], sizes = [2, 16], strides = [1, 1]} : vector<2x96xf32> to vector<2x16xf32>
    %210 = vector.extract_strided_slice %179 {offsets = [0, 48], sizes = [2, 16], strides = [1, 1]} : vector<2x96xf32> to vector<2x16xf32>
    %211 = arith.addf %209, %210 : vector<2x16xf32>
    %212 = arith.negf %211 : vector<2x16xf32>
    %213 = math.exp %212 : vector<2x16xf32>
    %cst_68 = arith.constant 1.000000e+00 : f32
    %214 = vector.broadcast %cst_68 : f32 to vector<2x16xf32>
    %215 = arith.addf %214, %213 : vector<2x16xf32>
    %216 = arith.divf %214, %215 : vector<2x16xf32>
    %217 = vector.extract_strided_slice %181 {offsets = [0, 64], sizes = [2, 16], strides = [1, 1]} : vector<2x96xf32> to vector<2x16xf32>
    %218 = vector.extract_strided_slice %179 {offsets = [0, 64], sizes = [2, 16], strides = [1, 1]} : vector<2x96xf32> to vector<2x16xf32>
    %219 = arith.addf %217, %218 : vector<2x16xf32>
    %220 = arith.negf %219 : vector<2x16xf32>
    %221 = math.exp %220 : vector<2x16xf32>
    %cst_69 = arith.constant 1.000000e+00 : f32
    %222 = vector.broadcast %cst_69 : f32 to vector<2x16xf32>
    %223 = arith.addf %222, %221 : vector<2x16xf32>
    %224 = arith.divf %222, %223 : vector<2x16xf32>
    %225 = vector.extract_strided_slice %181 {offsets = [0, 80], sizes = [2, 16], strides = [1, 1]} : vector<2x96xf32> to vector<2x16xf32>
    %226 = vector.extract_strided_slice %179 {offsets = [0, 80], sizes = [2, 16], strides = [1, 1]} : vector<2x96xf32> to vector<2x16xf32>
    %227 = arith.mulf %216, %226 : vector<2x16xf32>
    %228 = arith.addf %225, %227 : vector<2x16xf32>
    %229 = math.tanh %228 : vector<2x16xf32>
    %cst_70 = arith.constant 1.000000e+00 : f32
    %230 = vector.broadcast %cst_70 : f32 to vector<2x16xf32>
    %231 = arith.subf %230, %224 : vector<2x16xf32>
    %232 = arith.mulf %231, %229 : vector<2x16xf32>
    %233 = vector.extract_strided_slice %176 {offsets = [0, 16], sizes = [2, 16], strides = [1, 1]} : vector<2x32xf32> to vector<2x16xf32>
    %234 = arith.mulf %224, %233 : vector<2x16xf32>
    %235 = arith.addf %232, %234 : vector<2x16xf32>
    %c0_71 = arith.constant 0 : index
    %c0_72 = arith.constant 0 : index
    %236 = vector.load %arg12[%c0_71, %c0_72] : memref<2x32xf32, #tpu.memory_space<vmem>>, vector<2x16xf32>
    tpu.vector_store %arg12[%c0_71, %c0_72], %208 {strides = array<i32>} : memref<2x32xf32, #tpu.memory_space<vmem>>, vector<2x16xf32>,
    %c0_73 = arith.constant 0 : index
    %c16_74 = arith.constant 16 : index
    %237 = vector.load %arg12[%c0_73, %c16_74] : memref<2x32xf32, #tpu.memory_space<vmem>>, vector<2x16xf32>
    tpu.vector_store %arg12[%c0_73, %c16_74], %235 {strides = array<i32>} : memref<2x32xf32, #tpu.memory_space<vmem>>, vector<2x16xf32>,
    %c1_75 = arith.constant 1 : index
    %c0_76 = arith.constant 0 : index
    %c0_77 = arith.constant 0 : index
    %238 = vector.load %arg9[%c1_75, %c0_76, %c0_77] : memref<8x2x32xf32, #tpu.memory_space<vmem>>, vector<1x2x16xf32>
    %239 = vector.shape_cast %238 : vector<1x2x16xf32> to vector<2x16xf32>
    %240 = vector.shape_cast %208 : vector<2x16xf32> to vector<1x2x16xf32>
    tpu.vector_store %arg9[%c1_75, %c0_76, %c0_77], %240 {strides = array<i32>} : memref<8x2x32xf32, #tpu.memory_space<vmem>>, vector<1x2x16xf32>,
    %c6_78 = arith.constant 6 : index
    %c0_79 = arith.constant 0 : index
    %c16_80 = arith.constant 16 : index
    %241 = vector.load %arg9[%c6_78, %c0_79, %c16_80] : memref<8x2x32xf32, #tpu.memory_space<vmem>>, vector<1x2x16xf32>
    %242 = vector.shape_cast %241 : vector<1x2x16xf32> to vector<2x16xf32>
    %243 = vector.shape_cast %235 : vector<2x16xf32> to vector<1x2x16xf32>
    tpu.vector_store %arg9[%c6_78, %c0_79, %c16_80], %243 {strides = array<i32>} : memref<8x2x32xf32, #tpu.memory_space<vmem>>, vector<1x2x16xf32>,
    %c0_81 = arith.constant 0 : index
    %c0_82 = arith.constant 0 : index
    %244 = vector.load %arg12[%c0_81, %c0_82] : memref<2x32xf32, #tpu.memory_space<vmem>>, vector<2x32xf32>
    %cst_83 = arith.constant dense<0.000000e+00> : vector<2x96xf32>
    %245 = tpu.matmul %244, %106, %cst_83 {dimension_numbers = #tpu.dot_dimension_numbers<[1], [0], [0], [1], [0, 0, 1, 1], [], []>} : vector<2x32xf32>, vector<32x96xf32>, vector<2x96xf32> -> vector<2x96xf32>
    %246 = vector.broadcast %107 : vector<1x96xf32> to vector<2x96xf32>
    %247 = arith.addf %245, %246 : vector<2x96xf32>
    %248 = vector.extract_strided_slice %105 {offsets = [4, 0], sizes = [2, 96], strides = [1, 1]} : vector<16x96xf32> to vector<2x96xf32>
    %249 = vector.extract_strided_slice %105 {offsets = [10, 0], sizes = [2, 96], strides = [1, 1]} : vector<16x96xf32> to vector<2x96xf32>
    %250 = vector.extract_strided_slice %248 {offsets = [0, 0], sizes = [2, 16], strides = [1, 1]} : vector<2x96xf32> to vector<2x16xf32>
    %251 = vector.extract_strided_slice %247 {offsets = [0, 0], sizes = [2, 16], strides = [1, 1]} : vector<2x96xf32> to vector<2x16xf32>
    %252 = arith.addf %250, %251 : vector<2x16xf32>
    %253 = arith.negf %252 : vector<2x16xf32>
    %254 = math.exp %253 : vector<2x16xf32>
    %cst_84 = arith.constant 1.000000e+00 : f32
    %255 = vector.broadcast %cst_84 : f32 to vector<2x16xf32>
    %256 = arith.addf %255, %254 : vector<2x16xf32>
    %257 = arith.divf %255, %256 : vector<2x16xf32>
    %258 = vector.extract_strided_slice %248 {offsets = [0, 16], sizes = [2, 16], strides = [1, 1]} : vector<2x96xf32> to vector<2x16xf32>
    %259 = vector.extract_strided_slice %247 {offsets = [0, 16], sizes = [2, 16], strides = [1, 1]} : vector<2x96xf32> to vector<2x16xf32>
    %260 = arith.addf %258, %259 : vector<2x16xf32>
    %261 = arith.negf %260 : vector<2x16xf32>
    %262 = math.exp %261 : vector<2x16xf32>
    %cst_85 = arith.constant 1.000000e+00 : f32
    %263 = vector.broadcast %cst_85 : f32 to vector<2x16xf32>
    %264 = arith.addf %263, %262 : vector<2x16xf32>
    %265 = arith.divf %263, %264 : vector<2x16xf32>
    %266 = vector.extract_strided_slice %248 {offsets = [0, 32], sizes = [2, 16], strides = [1, 1]} : vector<2x96xf32> to vector<2x16xf32>
    %267 = vector.extract_strided_slice %247 {offsets = [0, 32], sizes = [2, 16], strides = [1, 1]} : vector<2x96xf32> to vector<2x16xf32>
    %268 = arith.mulf %257, %267 : vector<2x16xf32>
    %269 = arith.addf %266, %268 : vector<2x16xf32>
    %270 = math.tanh %269 : vector<2x16xf32>
    %cst_86 = arith.constant 1.000000e+00 : f32
    %271 = vector.broadcast %cst_86 : f32 to vector<2x16xf32>
    %272 = arith.subf %271, %265 : vector<2x16xf32>
    %273 = arith.mulf %272, %270 : vector<2x16xf32>
    %274 = vector.extract_strided_slice %244 {offsets = [0, 0], sizes = [2, 16], strides = [1, 1]} : vector<2x32xf32> to vector<2x16xf32>
    %275 = arith.mulf %265, %274 : vector<2x16xf32>
    %276 = arith.addf %273, %275 : vector<2x16xf32>
    %277 = vector.extract_strided_slice %249 {offsets = [0, 48], sizes = [2, 16], strides = [1, 1]} : vector<2x96xf32> to vector<2x16xf32>
    %278 = vector.extract_strided_slice %247 {offsets = [0, 48], sizes = [2, 16], strides = [1, 1]} : vector<2x96xf32> to vector<2x16xf32>
    %279 = arith.addf %277, %278 : vector<2x16xf32>
    %280 = arith.negf %279 : vector<2x16xf32>
    %281 = math.exp %280 : vector<2x16xf32>
    %cst_87 = arith.constant 1.000000e+00 : f32
    %282 = vector.broadcast %cst_87 : f32 to vector<2x16xf32>
    %283 = arith.addf %282, %281 : vector<2x16xf32>
    %284 = arith.divf %282, %283 : vector<2x16xf32>
    %285 = vector.extract_strided_slice %249 {offsets = [0, 64], sizes = [2, 16], strides = [1, 1]} : vector<2x96xf32> to vector<2x16xf32>
    %286 = vector.extract_strided_slice %247 {offsets = [0, 64], sizes = [2, 16], strides = [1, 1]} : vector<2x96xf32> to vector<2x16xf32>
    %287 = arith.addf %285, %286 : vector<2x16xf32>
    %288 = arith.negf %287 : vector<2x16xf32>
    %289 = math.exp %288 : vector<2x16xf32>
    %cst_88 = arith.constant 1.000000e+00 : f32
    %290 = vector.broadcast %cst_88 : f32 to vector<2x16xf32>
    %291 = arith.addf %290, %289 : vector<2x16xf32>
    %292 = arith.divf %290, %291 : vector<2x16xf32>
    %293 = vector.extract_strided_slice %249 {offsets = [0, 80], sizes = [2, 16], strides = [1, 1]} : vector<2x96xf32> to vector<2x16xf32>
    %294 = vector.extract_strided_slice %247 {offsets = [0, 80], sizes = [2, 16], strides = [1, 1]} : vector<2x96xf32> to vector<2x16xf32>
    %295 = arith.mulf %284, %294 : vector<2x16xf32>
    %296 = arith.addf %293, %295 : vector<2x16xf32>
    %297 = math.tanh %296 : vector<2x16xf32>
    %cst_89 = arith.constant 1.000000e+00 : f32
    %298 = vector.broadcast %cst_89 : f32 to vector<2x16xf32>
    %299 = arith.subf %298, %292 : vector<2x16xf32>
    %300 = arith.mulf %299, %297 : vector<2x16xf32>
    %301 = vector.extract_strided_slice %244 {offsets = [0, 16], sizes = [2, 16], strides = [1, 1]} : vector<2x32xf32> to vector<2x16xf32>
    %302 = arith.mulf %292, %301 : vector<2x16xf32>
    %303 = arith.addf %300, %302 : vector<2x16xf32>
    %c0_90 = arith.constant 0 : index
    %c0_91 = arith.constant 0 : index
    %304 = vector.load %arg12[%c0_90, %c0_91] : memref<2x32xf32, #tpu.memory_space<vmem>>, vector<2x16xf32>
    tpu.vector_store %arg12[%c0_90, %c0_91], %276 {strides = array<i32>} : memref<2x32xf32, #tpu.memory_space<vmem>>, vector<2x16xf32>,
    %c0_92 = arith.constant 0 : index
    %c16_93 = arith.constant 16 : index
    %305 = vector.load %arg12[%c0_92, %c16_93] : memref<2x32xf32, #tpu.memory_space<vmem>>, vector<2x16xf32>
    tpu.vector_store %arg12[%c0_92, %c16_93], %303 {strides = array<i32>} : memref<2x32xf32, #tpu.memory_space<vmem>>, vector<2x16xf32>,
    %c2_94 = arith.constant 2 : index
    %c0_95 = arith.constant 0 : index
    %c0_96 = arith.constant 0 : index
    %306 = vector.load %arg9[%c2_94, %c0_95, %c0_96] : memref<8x2x32xf32, #tpu.memory_space<vmem>>, vector<1x2x16xf32>
    %307 = vector.shape_cast %306 : vector<1x2x16xf32> to vector<2x16xf32>
    %308 = vector.shape_cast %276 : vector<2x16xf32> to vector<1x2x16xf32>
    tpu.vector_store %arg9[%c2_94, %c0_95, %c0_96], %308 {strides = array<i32>} : memref<8x2x32xf32, #tpu.memory_space<vmem>>, vector<1x2x16xf32>,
    %c5_97 = arith.constant 5 : index
    %c0_98 = arith.constant 0 : index
    %c16_99 = arith.constant 16 : index
    %309 = vector.load %arg9[%c5_97, %c0_98, %c16_99] : memref<8x2x32xf32, #tpu.memory_space<vmem>>, vector<1x2x16xf32>
    %310 = vector.shape_cast %309 : vector<1x2x16xf32> to vector<2x16xf32>
    %311 = vector.shape_cast %303 : vector<2x16xf32> to vector<1x2x16xf32>
    tpu.vector_store %arg9[%c5_97, %c0_98, %c16_99], %311 {strides = array<i32>} : memref<8x2x32xf32, #tpu.memory_space<vmem>>, vector<1x2x16xf32>,
    %c0_100 = arith.constant 0 : index
    %c0_101 = arith.constant 0 : index
    %312 = vector.load %arg12[%c0_100, %c0_101] : memref<2x32xf32, #tpu.memory_space<vmem>>, vector<2x32xf32>
    %cst_102 = arith.constant dense<0.000000e+00> : vector<2x96xf32>
    %313 = tpu.matmul %312, %106, %cst_102 {dimension_numbers = #tpu.dot_dimension_numbers<[1], [0], [0], [1], [0, 0, 1, 1], [], []>} : vector<2x32xf32>, vector<32x96xf32>, vector<2x96xf32> -> vector<2x96xf32>
    %314 = vector.broadcast %107 : vector<1x96xf32> to vector<2x96xf32>
    %315 = arith.addf %313, %314 : vector<2x96xf32>
    %316 = vector.extract_strided_slice %105 {offsets = [6, 0], sizes = [2, 96], strides = [1, 1]} : vector<16x96xf32> to vector<2x96xf32>
    %317 = vector.extract_strided_slice %105 {offsets = [8, 0], sizes = [2, 96], strides = [1, 1]} : vector<16x96xf32> to vector<2x96xf32>
    %318 = vector.extract_strided_slice %316 {offsets = [0, 0], sizes = [2, 16], strides = [1, 1]} : vector<2x96xf32> to vector<2x16xf32>
    %319 = vector.extract_strided_slice %315 {offsets = [0, 0], sizes = [2, 16], strides = [1, 1]} : vector<2x96xf32> to vector<2x16xf32>
    %320 = arith.addf %318, %319 : vector<2x16xf32>
    %321 = arith.negf %320 : vector<2x16xf32>
    %322 = math.exp %321 : vector<2x16xf32>
    %cst_103 = arith.constant 1.000000e+00 : f32
    %323 = vector.broadcast %cst_103 : f32 to vector<2x16xf32>
    %324 = arith.addf %323, %322 : vector<2x16xf32>
    %325 = arith.divf %323, %324 : vector<2x16xf32>
    %326 = vector.extract_strided_slice %316 {offsets = [0, 16], sizes = [2, 16], strides = [1, 1]} : vector<2x96xf32> to vector<2x16xf32>
    %327 = vector.extract_strided_slice %315 {offsets = [0, 16], sizes = [2, 16], strides = [1, 1]} : vector<2x96xf32> to vector<2x16xf32>
    %328 = arith.addf %326, %327 : vector<2x16xf32>
    %329 = arith.negf %328 : vector<2x16xf32>
    %330 = math.exp %329 : vector<2x16xf32>
    %cst_104 = arith.constant 1.000000e+00 : f32
    %331 = vector.broadcast %cst_104 : f32 to vector<2x16xf32>
    %332 = arith.addf %331, %330 : vector<2x16xf32>
    %333 = arith.divf %331, %332 : vector<2x16xf32>
    %334 = vector.extract_strided_slice %316 {offsets = [0, 32], sizes = [2, 16], strides = [1, 1]} : vector<2x96xf32> to vector<2x16xf32>
    %335 = vector.extract_strided_slice %315 {offsets = [0, 32], sizes = [2, 16], strides = [1, 1]} : vector<2x96xf32> to vector<2x16xf32>
    %336 = arith.mulf %325, %335 : vector<2x16xf32>
    %337 = arith.addf %334, %336 : vector<2x16xf32>
    %338 = math.tanh %337 : vector<2x16xf32>
    %cst_105 = arith.constant 1.000000e+00 : f32
    %339 = vector.broadcast %cst_105 : f32 to vector<2x16xf32>
    %340 = arith.subf %339, %333 : vector<2x16xf32>
    %341 = arith.mulf %340, %338 : vector<2x16xf32>
    %342 = vector.extract_strided_slice %312 {offsets = [0, 0], sizes = [2, 16], strides = [1, 1]} : vector<2x32xf32> to vector<2x16xf32>
    %343 = arith.mulf %333, %342 : vector<2x16xf32>
    %344 = arith.addf %341, %343 : vector<2x16xf32>
    %345 = vector.extract_strided_slice %317 {offsets = [0, 48], sizes = [2, 16], strides = [1, 1]} : vector<2x96xf32> to vector<2x16xf32>
    %346 = vector.extract_strided_slice %315 {offsets = [0, 48], sizes = [2, 16], strides = [1, 1]} : vector<2x96xf32> to vector<2x16xf32>
    %347 = arith.addf %345, %346 : vector<2x16xf32>
    %348 = arith.negf %347 : vector<2x16xf32>
    %349 = math.exp %348 : vector<2x16xf32>
    %cst_106 = arith.constant 1.000000e+00 : f32
    %350 = vector.broadcast %cst_106 : f32 to vector<2x16xf32>
    %351 = arith.addf %350, %349 : vector<2x16xf32>
    %352 = arith.divf %350, %351 : vector<2x16xf32>
    %353 = vector.extract_strided_slice %317 {offsets = [0, 64], sizes = [2, 16], strides = [1, 1]} : vector<2x96xf32> to vector<2x16xf32>
    %354 = vector.extract_strided_slice %315 {offsets = [0, 64], sizes = [2, 16], strides = [1, 1]} : vector<2x96xf32> to vector<2x16xf32>
    %355 = arith.addf %353, %354 : vector<2x16xf32>
    %356 = arith.negf %355 : vector<2x16xf32>
    %357 = math.exp %356 : vector<2x16xf32>
    %cst_107 = arith.constant 1.000000e+00 : f32
    %358 = vector.broadcast %cst_107 : f32 to vector<2x16xf32>
    %359 = arith.addf %358, %357 : vector<2x16xf32>
    %360 = arith.divf %358, %359 : vector<2x16xf32>
    %361 = vector.extract_strided_slice %317 {offsets = [0, 80], sizes = [2, 16], strides = [1, 1]} : vector<2x96xf32> to vector<2x16xf32>
    %362 = vector.extract_strided_slice %315 {offsets = [0, 80], sizes = [2, 16], strides = [1, 1]} : vector<2x96xf32> to vector<2x16xf32>
    %363 = arith.mulf %352, %362 : vector<2x16xf32>
    %364 = arith.addf %361, %363 : vector<2x16xf32>
    %365 = math.tanh %364 : vector<2x16xf32>
    %cst_108 = arith.constant 1.000000e+00 : f32
    %366 = vector.broadcast %cst_108 : f32 to vector<2x16xf32>
    %367 = arith.subf %366, %360 : vector<2x16xf32>
    %368 = arith.mulf %367, %365 : vector<2x16xf32>
    %369 = vector.extract_strided_slice %312 {offsets = [0, 16], sizes = [2, 16], strides = [1, 1]} : vector<2x32xf32> to vector<2x16xf32>
    %370 = arith.mulf %360, %369 : vector<2x16xf32>
    %371 = arith.addf %368, %370 : vector<2x16xf32>
    %c0_109 = arith.constant 0 : index
    %c0_110 = arith.constant 0 : index
    %372 = vector.load %arg12[%c0_109, %c0_110] : memref<2x32xf32, #tpu.memory_space<vmem>>, vector<2x16xf32>
    tpu.vector_store %arg12[%c0_109, %c0_110], %344 {strides = array<i32>} : memref<2x32xf32, #tpu.memory_space<vmem>>, vector<2x16xf32>,
    %c0_111 = arith.constant 0 : index
    %c16_112 = arith.constant 16 : index
    %373 = vector.load %arg12[%c0_111, %c16_112] : memref<2x32xf32, #tpu.memory_space<vmem>>, vector<2x16xf32>
    tpu.vector_store %arg12[%c0_111, %c16_112], %371 {strides = array<i32>} : memref<2x32xf32, #tpu.memory_space<vmem>>, vector<2x16xf32>,
    %c3_113 = arith.constant 3 : index
    %c0_114 = arith.constant 0 : index
    %c0_115 = arith.constant 0 : index
    %374 = vector.load %arg9[%c3_113, %c0_114, %c0_115] : memref<8x2x32xf32, #tpu.memory_space<vmem>>, vector<1x2x16xf32>
    %375 = vector.shape_cast %374 : vector<1x2x16xf32> to vector<2x16xf32>
    %376 = vector.shape_cast %344 : vector<2x16xf32> to vector<1x2x16xf32>
    tpu.vector_store %arg9[%c3_113, %c0_114, %c0_115], %376 {strides = array<i32>} : memref<8x2x32xf32, #tpu.memory_space<vmem>>, vector<1x2x16xf32>,
    %c4_116 = arith.constant 4 : index
    %c0_117 = arith.constant 0 : index
    %c16_118 = arith.constant 16 : index
    %377 = vector.load %arg9[%c4_116, %c0_117, %c16_118] : memref<8x2x32xf32, #tpu.memory_space<vmem>>, vector<1x2x16xf32>
    %378 = vector.shape_cast %377 : vector<1x2x16xf32> to vector<2x16xf32>
    %379 = vector.shape_cast %371 : vector<2x16xf32> to vector<1x2x16xf32>
    tpu.vector_store %arg9[%c4_116, %c0_117, %c16_118], %379 {strides = array<i32>} : memref<8x2x32xf32, #tpu.memory_space<vmem>>, vector<1x2x16xf32>,
    %c0_119 = arith.constant 0 : index
    %c0_120 = arith.constant 0 : index
    %380 = vector.load %arg12[%c0_119, %c0_120] : memref<2x32xf32, #tpu.memory_space<vmem>>, vector<2x32xf32>
    %cst_121 = arith.constant dense<0.000000e+00> : vector<2x96xf32>
    %381 = tpu.matmul %380, %106, %cst_121 {dimension_numbers = #tpu.dot_dimension_numbers<[1], [0], [0], [1], [0, 0, 1, 1], [], []>} : vector<2x32xf32>, vector<32x96xf32>, vector<2x96xf32> -> vector<2x96xf32>
    %382 = vector.broadcast %107 : vector<1x96xf32> to vector<2x96xf32>
    %383 = arith.addf %381, %382 : vector<2x96xf32>
    %384 = vector.extract_strided_slice %105 {offsets = [8, 0], sizes = [2, 96], strides = [1, 1]} : vector<16x96xf32> to vector<2x96xf32>
    %385 = vector.extract_strided_slice %105 {offsets = [6, 0], sizes = [2, 96], strides = [1, 1]} : vector<16x96xf32> to vector<2x96xf32>
    %386 = vector.extract_strided_slice %384 {offsets = [0, 0], sizes = [2, 16], strides = [1, 1]} : vector<2x96xf32> to vector<2x16xf32>
    %387 = vector.extract_strided_slice %383 {offsets = [0, 0], sizes = [2, 16], strides = [1, 1]} : vector<2x96xf32> to vector<2x16xf32>
    %388 = arith.addf %386, %387 : vector<2x16xf32>
    %389 = arith.negf %388 : vector<2x16xf32>
    %390 = math.exp %389 : vector<2x16xf32>
    %cst_122 = arith.constant 1.000000e+00 : f32
    %391 = vector.broadcast %cst_122 : f32 to vector<2x16xf32>
    %392 = arith.addf %391, %390 : vector<2x16xf32>
    %393 = arith.divf %391, %392 : vector<2x16xf32>
    %394 = vector.extract_strided_slice %384 {offsets = [0, 16], sizes = [2, 16], strides = [1, 1]} : vector<2x96xf32> to vector<2x16xf32>
    %395 = vector.extract_strided_slice %383 {offsets = [0, 16], sizes = [2, 16], strides = [1, 1]} : vector<2x96xf32> to vector<2x16xf32>
    %396 = arith.addf %394, %395 : vector<2x16xf32>
    %397 = arith.negf %396 : vector<2x16xf32>
    %398 = math.exp %397 : vector<2x16xf32>
    %cst_123 = arith.constant 1.000000e+00 : f32
    %399 = vector.broadcast %cst_123 : f32 to vector<2x16xf32>
    %400 = arith.addf %399, %398 : vector<2x16xf32>
    %401 = arith.divf %399, %400 : vector<2x16xf32>
    %402 = vector.extract_strided_slice %384 {offsets = [0, 32], sizes = [2, 16], strides = [1, 1]} : vector<2x96xf32> to vector<2x16xf32>
    %403 = vector.extract_strided_slice %383 {offsets = [0, 32], sizes = [2, 16], strides = [1, 1]} : vector<2x96xf32> to vector<2x16xf32>
    %404 = arith.mulf %393, %403 : vector<2x16xf32>
    %405 = arith.addf %402, %404 : vector<2x16xf32>
    %406 = math.tanh %405 : vector<2x16xf32>
    %cst_124 = arith.constant 1.000000e+00 : f32
    %407 = vector.broadcast %cst_124 : f32 to vector<2x16xf32>
    %408 = arith.subf %407, %401 : vector<2x16xf32>
    %409 = arith.mulf %408, %406 : vector<2x16xf32>
    %410 = vector.extract_strided_slice %380 {offsets = [0, 0], sizes = [2, 16], strides = [1, 1]} : vector<2x32xf32> to vector<2x16xf32>
    %411 = arith.mulf %401, %410 : vector<2x16xf32>
    %412 = arith.addf %409, %411 : vector<2x16xf32>
    %413 = vector.extract_strided_slice %385 {offsets = [0, 48], sizes = [2, 16], strides = [1, 1]} : vector<2x96xf32> to vector<2x16xf32>
    %414 = vector.extract_strided_slice %383 {offsets = [0, 48], sizes = [2, 16], strides = [1, 1]} : vector<2x96xf32> to vector<2x16xf32>
    %415 = arith.addf %413, %414 : vector<2x16xf32>
    %416 = arith.negf %415 : vector<2x16xf32>
    %417 = math.exp %416 : vector<2x16xf32>
    %cst_125 = arith.constant 1.000000e+00 : f32
    %418 = vector.broadcast %cst_125 : f32 to vector<2x16xf32>
    %419 = arith.addf %418, %417 : vector<2x16xf32>
    %420 = arith.divf %418, %419 : vector<2x16xf32>
    %421 = vector.extract_strided_slice %385 {offsets = [0, 64], sizes = [2, 16], strides = [1, 1]} : vector<2x96xf32> to vector<2x16xf32>
    %422 = vector.extract_strided_slice %383 {offsets = [0, 64], sizes = [2, 16], strides = [1, 1]} : vector<2x96xf32> to vector<2x16xf32>
    %423 = arith.addf %421, %422 : vector<2x16xf32>
    %424 = arith.negf %423 : vector<2x16xf32>
    %425 = math.exp %424 : vector<2x16xf32>
    %cst_126 = arith.constant 1.000000e+00 : f32
    %426 = vector.broadcast %cst_126 : f32 to vector<2x16xf32>
    %427 = arith.addf %426, %425 : vector<2x16xf32>
    %428 = arith.divf %426, %427 : vector<2x16xf32>
    %429 = vector.extract_strided_slice %385 {offsets = [0, 80], sizes = [2, 16], strides = [1, 1]} : vector<2x96xf32> to vector<2x16xf32>
    %430 = vector.extract_strided_slice %383 {offsets = [0, 80], sizes = [2, 16], strides = [1, 1]} : vector<2x96xf32> to vector<2x16xf32>
    %431 = arith.mulf %420, %430 : vector<2x16xf32>
    %432 = arith.addf %429, %431 : vector<2x16xf32>
    %433 = math.tanh %432 : vector<2x16xf32>
    %cst_127 = arith.constant 1.000000e+00 : f32
    %434 = vector.broadcast %cst_127 : f32 to vector<2x16xf32>
    %435 = arith.subf %434, %428 : vector<2x16xf32>
    %436 = arith.mulf %435, %433 : vector<2x16xf32>
    %437 = vector.extract_strided_slice %380 {offsets = [0, 16], sizes = [2, 16], strides = [1, 1]} : vector<2x32xf32> to vector<2x16xf32>
    %438 = arith.mulf %428, %437 : vector<2x16xf32>
    %439 = arith.addf %436, %438 : vector<2x16xf32>
    %c0_128 = arith.constant 0 : index
    %c0_129 = arith.constant 0 : index
    %440 = vector.load %arg12[%c0_128, %c0_129] : memref<2x32xf32, #tpu.memory_space<vmem>>, vector<2x16xf32>
    tpu.vector_store %arg12[%c0_128, %c0_129], %412 {strides = array<i32>} : memref<2x32xf32, #tpu.memory_space<vmem>>, vector<2x16xf32>,
    %c0_130 = arith.constant 0 : index
    %c16_131 = arith.constant 16 : index
    %441 = vector.load %arg12[%c0_130, %c16_131] : memref<2x32xf32, #tpu.memory_space<vmem>>, vector<2x16xf32>
    tpu.vector_store %arg12[%c0_130, %c16_131], %439 {strides = array<i32>} : memref<2x32xf32, #tpu.memory_space<vmem>>, vector<2x16xf32>,
    %c4_132 = arith.constant 4 : index
    %c0_133 = arith.constant 0 : index
    %c0_134 = arith.constant 0 : index
    %442 = vector.load %arg9[%c4_132, %c0_133, %c0_134] : memref<8x2x32xf32, #tpu.memory_space<vmem>>, vector<1x2x16xf32>
    %443 = vector.shape_cast %442 : vector<1x2x16xf32> to vector<2x16xf32>
    %444 = vector.shape_cast %412 : vector<2x16xf32> to vector<1x2x16xf32>
    tpu.vector_store %arg9[%c4_132, %c0_133, %c0_134], %444 {strides = array<i32>} : memref<8x2x32xf32, #tpu.memory_space<vmem>>, vector<1x2x16xf32>,
    %c3_135 = arith.constant 3 : index
    %c0_136 = arith.constant 0 : index
    %c16_137 = arith.constant 16 : index
    %445 = vector.load %arg9[%c3_135, %c0_136, %c16_137] : memref<8x2x32xf32, #tpu.memory_space<vmem>>, vector<1x2x16xf32>
    %446 = vector.shape_cast %445 : vector<1x2x16xf32> to vector<2x16xf32>
    %447 = vector.shape_cast %439 : vector<2x16xf32> to vector<1x2x16xf32>
    tpu.vector_store %arg9[%c3_135, %c0_136, %c16_137], %447 {strides = array<i32>} : memref<8x2x32xf32, #tpu.memory_space<vmem>>, vector<1x2x16xf32>,
    %c0_138 = arith.constant 0 : index
    %c0_139 = arith.constant 0 : index
    %448 = vector.load %arg12[%c0_138, %c0_139] : memref<2x32xf32, #tpu.memory_space<vmem>>, vector<2x32xf32>
    %cst_140 = arith.constant dense<0.000000e+00> : vector<2x96xf32>
    %449 = tpu.matmul %448, %106, %cst_140 {dimension_numbers = #tpu.dot_dimension_numbers<[1], [0], [0], [1], [0, 0, 1, 1], [], []>} : vector<2x32xf32>, vector<32x96xf32>, vector<2x96xf32> -> vector<2x96xf32>
    %450 = vector.broadcast %107 : vector<1x96xf32> to vector<2x96xf32>
    %451 = arith.addf %449, %450 : vector<2x96xf32>
    %452 = vector.extract_strided_slice %105 {offsets = [10, 0], sizes = [2, 96], strides = [1, 1]} : vector<16x96xf32> to vector<2x96xf32>
    %453 = vector.extract_strided_slice %105 {offsets = [4, 0], sizes = [2, 96], strides = [1, 1]} : vector<16x96xf32> to vector<2x96xf32>
    %454 = vector.extract_strided_slice %452 {offsets = [0, 0], sizes = [2, 16], strides = [1, 1]} : vector<2x96xf32> to vector<2x16xf32>
    %455 = vector.extract_strided_slice %451 {offsets = [0, 0], sizes = [2, 16], strides = [1, 1]} : vector<2x96xf32> to vector<2x16xf32>
    %456 = arith.addf %454, %455 : vector<2x16xf32>
    %457 = arith.negf %456 : vector<2x16xf32>
    %458 = math.exp %457 : vector<2x16xf32>
    %cst_141 = arith.constant 1.000000e+00 : f32
    %459 = vector.broadcast %cst_141 : f32 to vector<2x16xf32>
    %460 = arith.addf %459, %458 : vector<2x16xf32>
    %461 = arith.divf %459, %460 : vector<2x16xf32>
    %462 = vector.extract_strided_slice %452 {offsets = [0, 16], sizes = [2, 16], strides = [1, 1]} : vector<2x96xf32> to vector<2x16xf32>
    %463 = vector.extract_strided_slice %451 {offsets = [0, 16], sizes = [2, 16], strides = [1, 1]} : vector<2x96xf32> to vector<2x16xf32>
    %464 = arith.addf %462, %463 : vector<2x16xf32>
    %465 = arith.negf %464 : vector<2x16xf32>
    %466 = math.exp %465 : vector<2x16xf32>
    %cst_142 = arith.constant 1.000000e+00 : f32
    %467 = vector.broadcast %cst_142 : f32 to vector<2x16xf32>
    %468 = arith.addf %467, %466 : vector<2x16xf32>
    %469 = arith.divf %467, %468 : vector<2x16xf32>
    %470 = vector.extract_strided_slice %452 {offsets = [0, 32], sizes = [2, 16], strides = [1, 1]} : vector<2x96xf32> to vector<2x16xf32>
    %471 = vector.extract_strided_slice %451 {offsets = [0, 32], sizes = [2, 16], strides = [1, 1]} : vector<2x96xf32> to vector<2x16xf32>
    %472 = arith.mulf %461, %471 : vector<2x16xf32>
    %473 = arith.addf %470, %472 : vector<2x16xf32>
    %474 = math.tanh %473 : vector<2x16xf32>
    %cst_143 = arith.constant 1.000000e+00 : f32
    %475 = vector.broadcast %cst_143 : f32 to vector<2x16xf32>
    %476 = arith.subf %475, %469 : vector<2x16xf32>
    %477 = arith.mulf %476, %474 : vector<2x16xf32>
    %478 = vector.extract_strided_slice %448 {offsets = [0, 0], sizes = [2, 16], strides = [1, 1]} : vector<2x32xf32> to vector<2x16xf32>
    %479 = arith.mulf %469, %478 : vector<2x16xf32>
    %480 = arith.addf %477, %479 : vector<2x16xf32>
    %481 = vector.extract_strided_slice %453 {offsets = [0, 48], sizes = [2, 16], strides = [1, 1]} : vector<2x96xf32> to vector<2x16xf32>
    %482 = vector.extract_strided_slice %451 {offsets = [0, 48], sizes = [2, 16], strides = [1, 1]} : vector<2x96xf32> to vector<2x16xf32>
    %483 = arith.addf %481, %482 : vector<2x16xf32>
    %484 = arith.negf %483 : vector<2x16xf32>
    %485 = math.exp %484 : vector<2x16xf32>
    %cst_144 = arith.constant 1.000000e+00 : f32
    %486 = vector.broadcast %cst_144 : f32 to vector<2x16xf32>
    %487 = arith.addf %486, %485 : vector<2x16xf32>
    %488 = arith.divf %486, %487 : vector<2x16xf32>
    %489 = vector.extract_strided_slice %453 {offsets = [0, 64], sizes = [2, 16], strides = [1, 1]} : vector<2x96xf32> to vector<2x16xf32>
    %490 = vector.extract_strided_slice %451 {offsets = [0, 64], sizes = [2, 16], strides = [1, 1]} : vector<2x96xf32> to vector<2x16xf32>
    %491 = arith.addf %489, %490 : vector<2x16xf32>
    %492 = arith.negf %491 : vector<2x16xf32>
    %493 = math.exp %492 : vector<2x16xf32>
    %cst_145 = arith.constant 1.000000e+00 : f32
    %494 = vector.broadcast %cst_145 : f32 to vector<2x16xf32>
    %495 = arith.addf %494, %493 : vector<2x16xf32>
    %496 = arith.divf %494, %495 : vector<2x16xf32>
    %497 = vector.extract_strided_slice %453 {offsets = [0, 80], sizes = [2, 16], strides = [1, 1]} : vector<2x96xf32> to vector<2x16xf32>
    %498 = vector.extract_strided_slice %451 {offsets = [0, 80], sizes = [2, 16], strides = [1, 1]} : vector<2x96xf32> to vector<2x16xf32>
    %499 = arith.mulf %488, %498 : vector<2x16xf32>
    %500 = arith.addf %497, %499 : vector<2x16xf32>
    %501 = math.tanh %500 : vector<2x16xf32>
    %cst_146 = arith.constant 1.000000e+00 : f32
    %502 = vector.broadcast %cst_146 : f32 to vector<2x16xf32>
    %503 = arith.subf %502, %496 : vector<2x16xf32>
    %504 = arith.mulf %503, %501 : vector<2x16xf32>
    %505 = vector.extract_strided_slice %448 {offsets = [0, 16], sizes = [2, 16], strides = [1, 1]} : vector<2x32xf32> to vector<2x16xf32>
    %506 = arith.mulf %496, %505 : vector<2x16xf32>
    %507 = arith.addf %504, %506 : vector<2x16xf32>
    %c0_147 = arith.constant 0 : index
    %c0_148 = arith.constant 0 : index
    %508 = vector.load %arg12[%c0_147, %c0_148] : memref<2x32xf32, #tpu.memory_space<vmem>>, vector<2x16xf32>
    tpu.vector_store %arg12[%c0_147, %c0_148], %480 {strides = array<i32>} : memref<2x32xf32, #tpu.memory_space<vmem>>, vector<2x16xf32>,
    %c0_149 = arith.constant 0 : index
    %c16_150 = arith.constant 16 : index
    %509 = vector.load %arg12[%c0_149, %c16_150] : memref<2x32xf32, #tpu.memory_space<vmem>>, vector<2x16xf32>
    tpu.vector_store %arg12[%c0_149, %c16_150], %507 {strides = array<i32>} : memref<2x32xf32, #tpu.memory_space<vmem>>, vector<2x16xf32>,
    %c5_151 = arith.constant 5 : index
    %c0_152 = arith.constant 0 : index
    %c0_153 = arith.constant 0 : index
    %510 = vector.load %arg9[%c5_151, %c0_152, %c0_153] : memref<8x2x32xf32, #tpu.memory_space<vmem>>, vector<1x2x16xf32>
    %511 = vector.shape_cast %510 : vector<1x2x16xf32> to vector<2x16xf32>
    %512 = vector.shape_cast %480 : vector<2x16xf32> to vector<1x2x16xf32>
    tpu.vector_store %arg9[%c5_151, %c0_152, %c0_153], %512 {strides = array<i32>} : memref<8x2x32xf32, #tpu.memory_space<vmem>>, vector<1x2x16xf32>,
    %c2_154 = arith.constant 2 : index
    %c0_155 = arith.constant 0 : index
    %c16_156 = arith.constant 16 : index
    %513 = vector.load %arg9[%c2_154, %c0_155, %c16_156] : memref<8x2x32xf32, #tpu.memory_space<vmem>>, vector<1x2x16xf32>
    %514 = vector.shape_cast %513 : vector<1x2x16xf32> to vector<2x16xf32>
    %515 = vector.shape_cast %507 : vector<2x16xf32> to vector<1x2x16xf32>
    tpu.vector_store %arg9[%c2_154, %c0_155, %c16_156], %515 {strides = array<i32>} : memref<8x2x32xf32, #tpu.memory_space<vmem>>, vector<1x2x16xf32>,
    %c0_157 = arith.constant 0 : index
    %c0_158 = arith.constant 0 : index
    %516 = vector.load %arg12[%c0_157, %c0_158] : memref<2x32xf32, #tpu.memory_space<vmem>>, vector<2x32xf32>
    %cst_159 = arith.constant dense<0.000000e+00> : vector<2x96xf32>
    %517 = tpu.matmul %516, %106, %cst_159 {dimension_numbers = #tpu.dot_dimension_numbers<[1], [0], [0], [1], [0, 0, 1, 1], [], []>} : vector<2x32xf32>, vector<32x96xf32>, vector<2x96xf32> -> vector<2x96xf32>
    %518 = vector.broadcast %107 : vector<1x96xf32> to vector<2x96xf32>
    %519 = arith.addf %517, %518 : vector<2x96xf32>
    %520 = vector.extract_strided_slice %105 {offsets = [12, 0], sizes = [2, 96], strides = [1, 1]} : vector<16x96xf32> to vector<2x96xf32>
    %521 = vector.extract_strided_slice %105 {offsets = [2, 0], sizes = [2, 96], strides = [1, 1]} : vector<16x96xf32> to vector<2x96xf32>
    %522 = vector.extract_strided_slice %520 {offsets = [0, 0], sizes = [2, 16], strides = [1, 1]} : vector<2x96xf32> to vector<2x16xf32>
    %523 = vector.extract_strided_slice %519 {offsets = [0, 0], sizes = [2, 16], strides = [1, 1]} : vector<2x96xf32> to vector<2x16xf32>
    %524 = arith.addf %522, %523 : vector<2x16xf32>
    %525 = arith.negf %524 : vector<2x16xf32>
    %526 = math.exp %525 : vector<2x16xf32>
    %cst_160 = arith.constant 1.000000e+00 : f32
    %527 = vector.broadcast %cst_160 : f32 to vector<2x16xf32>
    %528 = arith.addf %527, %526 : vector<2x16xf32>
    %529 = arith.divf %527, %528 : vector<2x16xf32>
    %530 = vector.extract_strided_slice %520 {offsets = [0, 16], sizes = [2, 16], strides = [1, 1]} : vector<2x96xf32> to vector<2x16xf32>
    %531 = vector.extract_strided_slice %519 {offsets = [0, 16], sizes = [2, 16], strides = [1, 1]} : vector<2x96xf32> to vector<2x16xf32>
    %532 = arith.addf %530, %531 : vector<2x16xf32>
    %533 = arith.negf %532 : vector<2x16xf32>
    %534 = math.exp %533 : vector<2x16xf32>
    %cst_161 = arith.constant 1.000000e+00 : f32
    %535 = vector.broadcast %cst_161 : f32 to vector<2x16xf32>
    %536 = arith.addf %535, %534 : vector<2x16xf32>
    %537 = arith.divf %535, %536 : vector<2x16xf32>
    %538 = vector.extract_strided_slice %520 {offsets = [0, 32], sizes = [2, 16], strides = [1, 1]} : vector<2x96xf32> to vector<2x16xf32>
    %539 = vector.extract_strided_slice %519 {offsets = [0, 32], sizes = [2, 16], strides = [1, 1]} : vector<2x96xf32> to vector<2x16xf32>
    %540 = arith.mulf %529, %539 : vector<2x16xf32>
    %541 = arith.addf %538, %540 : vector<2x16xf32>
    %542 = math.tanh %541 : vector<2x16xf32>
    %cst_162 = arith.constant 1.000000e+00 : f32
    %543 = vector.broadcast %cst_162 : f32 to vector<2x16xf32>
    %544 = arith.subf %543, %537 : vector<2x16xf32>
    %545 = arith.mulf %544, %542 : vector<2x16xf32>
    %546 = vector.extract_strided_slice %516 {offsets = [0, 0], sizes = [2, 16], strides = [1, 1]} : vector<2x32xf32> to vector<2x16xf32>
    %547 = arith.mulf %537, %546 : vector<2x16xf32>
    %548 = arith.addf %545, %547 : vector<2x16xf32>
    %549 = vector.extract_strided_slice %521 {offsets = [0, 48], sizes = [2, 16], strides = [1, 1]} : vector<2x96xf32> to vector<2x16xf32>
    %550 = vector.extract_strided_slice %519 {offsets = [0, 48], sizes = [2, 16], strides = [1, 1]} : vector<2x96xf32> to vector<2x16xf32>
    %551 = arith.addf %549, %550 : vector<2x16xf32>
    %552 = arith.negf %551 : vector<2x16xf32>
    %553 = math.exp %552 : vector<2x16xf32>
    %cst_163 = arith.constant 1.000000e+00 : f32
    %554 = vector.broadcast %cst_163 : f32 to vector<2x16xf32>
    %555 = arith.addf %554, %553 : vector<2x16xf32>
    %556 = arith.divf %554, %555 : vector<2x16xf32>
    %557 = vector.extract_strided_slice %521 {offsets = [0, 64], sizes = [2, 16], strides = [1, 1]} : vector<2x96xf32> to vector<2x16xf32>
    %558 = vector.extract_strided_slice %519 {offsets = [0, 64], sizes = [2, 16], strides = [1, 1]} : vector<2x96xf32> to vector<2x16xf32>
    %559 = arith.addf %557, %558 : vector<2x16xf32>
    %560 = arith.negf %559 : vector<2x16xf32>
    %561 = math.exp %560 : vector<2x16xf32>
    %cst_164 = arith.constant 1.000000e+00 : f32
    %562 = vector.broadcast %cst_164 : f32 to vector<2x16xf32>
    %563 = arith.addf %562, %561 : vector<2x16xf32>
    %564 = arith.divf %562, %563 : vector<2x16xf32>
    %565 = vector.extract_strided_slice %521 {offsets = [0, 80], sizes = [2, 16], strides = [1, 1]} : vector<2x96xf32> to vector<2x16xf32>
    %566 = vector.extract_strided_slice %519 {offsets = [0, 80], sizes = [2, 16], strides = [1, 1]} : vector<2x96xf32> to vector<2x16xf32>
    %567 = arith.mulf %556, %566 : vector<2x16xf32>
    %568 = arith.addf %565, %567 : vector<2x16xf32>
    %569 = math.tanh %568 : vector<2x16xf32>
    %cst_165 = arith.constant 1.000000e+00 : f32
    %570 = vector.broadcast %cst_165 : f32 to vector<2x16xf32>
    %571 = arith.subf %570, %564 : vector<2x16xf32>
    %572 = arith.mulf %571, %569 : vector<2x16xf32>
    %573 = vector.extract_strided_slice %516 {offsets = [0, 16], sizes = [2, 16], strides = [1, 1]} : vector<2x32xf32> to vector<2x16xf32>
    %574 = arith.mulf %564, %573 : vector<2x16xf32>
    %575 = arith.addf %572, %574 : vector<2x16xf32>
    %c0_166 = arith.constant 0 : index
    %c0_167 = arith.constant 0 : index
    %576 = vector.load %arg12[%c0_166, %c0_167] : memref<2x32xf32, #tpu.memory_space<vmem>>, vector<2x16xf32>
    tpu.vector_store %arg12[%c0_166, %c0_167], %548 {strides = array<i32>} : memref<2x32xf32, #tpu.memory_space<vmem>>, vector<2x16xf32>,
    %c0_168 = arith.constant 0 : index
    %c16_169 = arith.constant 16 : index
    %577 = vector.load %arg12[%c0_168, %c16_169] : memref<2x32xf32, #tpu.memory_space<vmem>>, vector<2x16xf32>
    tpu.vector_store %arg12[%c0_168, %c16_169], %575 {strides = array<i32>} : memref<2x32xf32, #tpu.memory_space<vmem>>, vector<2x16xf32>,
    %c6_170 = arith.constant 6 : index
    %c0_171 = arith.constant 0 : index
    %c0_172 = arith.constant 0 : index
    %578 = vector.load %arg9[%c6_170, %c0_171, %c0_172] : memref<8x2x32xf32, #tpu.memory_space<vmem>>, vector<1x2x16xf32>
    %579 = vector.shape_cast %578 : vector<1x2x16xf32> to vector<2x16xf32>
    %580 = vector.shape_cast %548 : vector<2x16xf32> to vector<1x2x16xf32>
    tpu.vector_store %arg9[%c6_170, %c0_171, %c0_172], %580 {strides = array<i32>} : memref<8x2x32xf32, #tpu.memory_space<vmem>>, vector<1x2x16xf32>,
    %c1_173 = arith.constant 1 : index
    %c0_174 = arith.constant 0 : index
    %c16_175 = arith.constant 16 : index
    %581 = vector.load %arg9[%c1_173, %c0_174, %c16_175] : memref<8x2x32xf32, #tpu.memory_space<vmem>>, vector<1x2x16xf32>
    %582 = vector.shape_cast %581 : vector<1x2x16xf32> to vector<2x16xf32>
    %583 = vector.shape_cast %575 : vector<2x16xf32> to vector<1x2x16xf32>
    tpu.vector_store %arg9[%c1_173, %c0_174, %c16_175], %583 {strides = array<i32>} : memref<8x2x32xf32, #tpu.memory_space<vmem>>, vector<1x2x16xf32>,
    %c0_176 = arith.constant 0 : index
    %c0_177 = arith.constant 0 : index
    %584 = vector.load %arg12[%c0_176, %c0_177] : memref<2x32xf32, #tpu.memory_space<vmem>>, vector<2x32xf32>
    %cst_178 = arith.constant dense<0.000000e+00> : vector<2x96xf32>
    %585 = tpu.matmul %584, %106, %cst_178 {dimension_numbers = #tpu.dot_dimension_numbers<[1], [0], [0], [1], [0, 0, 1, 1], [], []>} : vector<2x32xf32>, vector<32x96xf32>, vector<2x96xf32> -> vector<2x96xf32>
    %586 = vector.broadcast %107 : vector<1x96xf32> to vector<2x96xf32>
    %587 = arith.addf %585, %586 : vector<2x96xf32>
    %588 = vector.extract_strided_slice %105 {offsets = [14, 0], sizes = [2, 96], strides = [1, 1]} : vector<16x96xf32> to vector<2x96xf32>
    %589 = vector.extract_strided_slice %105 {offsets = [0, 0], sizes = [2, 96], strides = [1, 1]} : vector<16x96xf32> to vector<2x96xf32>
    %590 = vector.extract_strided_slice %588 {offsets = [0, 0], sizes = [2, 16], strides = [1, 1]} : vector<2x96xf32> to vector<2x16xf32>
    %591 = vector.extract_strided_slice %587 {offsets = [0, 0], sizes = [2, 16], strides = [1, 1]} : vector<2x96xf32> to vector<2x16xf32>
    %592 = arith.addf %590, %591 : vector<2x16xf32>
    %593 = arith.negf %592 : vector<2x16xf32>
    %594 = math.exp %593 : vector<2x16xf32>
    %cst_179 = arith.constant 1.000000e+00 : f32
    %595 = vector.broadcast %cst_179 : f32 to vector<2x16xf32>
    %596 = arith.addf %595, %594 : vector<2x16xf32>
    %597 = arith.divf %595, %596 : vector<2x16xf32>
    %598 = vector.extract_strided_slice %588 {offsets = [0, 16], sizes = [2, 16], strides = [1, 1]} : vector<2x96xf32> to vector<2x16xf32>
    %599 = vector.extract_strided_slice %587 {offsets = [0, 16], sizes = [2, 16], strides = [1, 1]} : vector<2x96xf32> to vector<2x16xf32>
    %600 = arith.addf %598, %599 : vector<2x16xf32>
    %601 = arith.negf %600 : vector<2x16xf32>
    %602 = math.exp %601 : vector<2x16xf32>
    %cst_180 = arith.constant 1.000000e+00 : f32
    %603 = vector.broadcast %cst_180 : f32 to vector<2x16xf32>
    %604 = arith.addf %603, %602 : vector<2x16xf32>
    %605 = arith.divf %603, %604 : vector<2x16xf32>
    %606 = vector.extract_strided_slice %588 {offsets = [0, 32], sizes = [2, 16], strides = [1, 1]} : vector<2x96xf32> to vector<2x16xf32>
    %607 = vector.extract_strided_slice %587 {offsets = [0, 32], sizes = [2, 16], strides = [1, 1]} : vector<2x96xf32> to vector<2x16xf32>
    %608 = arith.mulf %597, %607 : vector<2x16xf32>
    %609 = arith.addf %606, %608 : vector<2x16xf32>
    %610 = math.tanh %609 : vector<2x16xf32>
    %cst_181 = arith.constant 1.000000e+00 : f32
    %611 = vector.broadcast %cst_181 : f32 to vector<2x16xf32>
    %612 = arith.subf %611, %605 : vector<2x16xf32>
    %613 = arith.mulf %612, %610 : vector<2x16xf32>
    %614 = vector.extract_strided_slice %584 {offsets = [0, 0], sizes = [2, 16], strides = [1, 1]} : vector<2x32xf32> to vector<2x16xf32>
    %615 = arith.mulf %605, %614 : vector<2x16xf32>
    %616 = arith.addf %613, %615 : vector<2x16xf32>
    %617 = vector.extract_strided_slice %589 {offsets = [0, 48], sizes = [2, 16], strides = [1, 1]} : vector<2x96xf32> to vector<2x16xf32>
    %618 = vector.extract_strided_slice %587 {offsets = [0, 48], sizes = [2, 16], strides = [1, 1]} : vector<2x96xf32> to vector<2x16xf32>
    %619 = arith.addf %617, %618 : vector<2x16xf32>
    %620 = arith.negf %619 : vector<2x16xf32>
    %621 = math.exp %620 : vector<2x16xf32>
    %cst_182 = arith.constant 1.000000e+00 : f32
    %622 = vector.broadcast %cst_182 : f32 to vector<2x16xf32>
    %623 = arith.addf %622, %621 : vector<2x16xf32>
    %624 = arith.divf %622, %623 : vector<2x16xf32>
    %625 = vector.extract_strided_slice %589 {offsets = [0, 64], sizes = [2, 16], strides = [1, 1]} : vector<2x96xf32> to vector<2x16xf32>
    %626 = vector.extract_strided_slice %587 {offsets = [0, 64], sizes = [2, 16], strides = [1, 1]} : vector<2x96xf32> to vector<2x16xf32>
    %627 = arith.addf %625, %626 : vector<2x16xf32>
    %628 = arith.negf %627 : vector<2x16xf32>
    %629 = math.exp %628 : vector<2x16xf32>
    %cst_183 = arith.constant 1.000000e+00 : f32
    %630 = vector.broadcast %cst_183 : f32 to vector<2x16xf32>
    %631 = arith.addf %630, %629 : vector<2x16xf32>
    %632 = arith.divf %630, %631 : vector<2x16xf32>
    %633 = vector.extract_strided_slice %589 {offsets = [0, 80], sizes = [2, 16], strides = [1, 1]} : vector<2x96xf32> to vector<2x16xf32>
    %634 = vector.extract_strided_slice %587 {offsets = [0, 80], sizes = [2, 16], strides = [1, 1]} : vector<2x96xf32> to vector<2x16xf32>
    %635 = arith.mulf %624, %634 : vector<2x16xf32>
    %636 = arith.addf %633, %635 : vector<2x16xf32>
    %637 = math.tanh %636 : vector<2x16xf32>
    %cst_184 = arith.constant 1.000000e+00 : f32
    %638 = vector.broadcast %cst_184 : f32 to vector<2x16xf32>
    %639 = arith.subf %638, %632 : vector<2x16xf32>
    %640 = arith.mulf %639, %637 : vector<2x16xf32>
    %641 = vector.extract_strided_slice %584 {offsets = [0, 16], sizes = [2, 16], strides = [1, 1]} : vector<2x32xf32> to vector<2x16xf32>
    %642 = arith.mulf %632, %641 : vector<2x16xf32>
    %643 = arith.addf %640, %642 : vector<2x16xf32>
    %c0_185 = arith.constant 0 : index
    %c0_186 = arith.constant 0 : index
    %644 = vector.load %arg12[%c0_185, %c0_186] : memref<2x32xf32, #tpu.memory_space<vmem>>, vector<2x16xf32>
    tpu.vector_store %arg12[%c0_185, %c0_186], %616 {strides = array<i32>} : memref<2x32xf32, #tpu.memory_space<vmem>>, vector<2x16xf32>,
    %c0_187 = arith.constant 0 : index
    %c16_188 = arith.constant 16 : index
    %645 = vector.load %arg12[%c0_187, %c16_188] : memref<2x32xf32, #tpu.memory_space<vmem>>, vector<2x16xf32>
    tpu.vector_store %arg12[%c0_187, %c16_188], %643 {strides = array<i32>} : memref<2x32xf32, #tpu.memory_space<vmem>>, vector<2x16xf32>,
    %c7_189 = arith.constant 7 : index
    %c0_190 = arith.constant 0 : index
    %c0_191 = arith.constant 0 : index
    %646 = vector.load %arg9[%c7_189, %c0_190, %c0_191] : memref<8x2x32xf32, #tpu.memory_space<vmem>>, vector<1x2x16xf32>
    %647 = vector.shape_cast %646 : vector<1x2x16xf32> to vector<2x16xf32>
    %648 = vector.shape_cast %616 : vector<2x16xf32> to vector<1x2x16xf32>
    tpu.vector_store %arg9[%c7_189, %c0_190, %c0_191], %648 {strides = array<i32>} : memref<8x2x32xf32, #tpu.memory_space<vmem>>, vector<1x2x16xf32>,
    %c0_192 = arith.constant 0 : index
    %c0_193 = arith.constant 0 : index
    %c16_194 = arith.constant 16 : index
    %649 = vector.load %arg9[%c0_192, %c0_193, %c16_194] : memref<8x2x32xf32, #tpu.memory_space<vmem>>, vector<1x2x16xf32>
    %650 = vector.shape_cast %649 : vector<1x2x16xf32> to vector<2x16xf32>
    %651 = vector.shape_cast %643 : vector<2x16xf32> to vector<1x2x16xf32>
    tpu.vector_store %arg9[%c0_192, %c0_193, %c16_194], %651 {strides = array<i32>} : memref<8x2x32xf32, #tpu.memory_space<vmem>>, vector<1x2x16xf32>,
    %c0_i32_195 = arith.constant 0 : i32
    %652 = arith.cmpi eq, %arg0, %c0_i32_195 : i32
    %653 = arith.extui %652 : i1 to i32
    %c0_i32_196 = arith.constant 0 : i32
    %654 = arith.cmpi ne, %653, %c0_i32_196 : i32
    scf.if %654 {
      %c0_197 = arith.constant 0 : index
      %c0_198 = arith.constant 0 : index
      %655 = vector.load %arg12[%c0_197, %c0_198] : memref<2x32xf32, #tpu.memory_space<vmem>>, vector<2x32xf32>
      %c0_199 = arith.constant 0 : index
      %c0_200 = arith.constant 0 : index
      %656 = vector.load %arg7[%c0_199, %c0_200] : memref<32x32xf32, #tpu.memory_space<vmem>>, vector<32x32xf32>
      %cst_201 = arith.constant dense<0.000000e+00> : vector<2x32xf32>
      %657 = tpu.matmul %655, %656, %cst_201 {dimension_numbers = #tpu.dot_dimension_numbers<[1], [0], [0], [1], [0, 0, 1, 1], [], []>} : vector<2x32xf32>, vector<32x32xf32>, vector<2x32xf32> -> vector<2x32xf32>
      %c0_202 = arith.constant 0 : index
      %c0_203 = arith.constant 0 : index
      %658 = vector.load %arg8[%c0_202, %c0_203] : memref<1x32xf32, #tpu.memory_space<vmem>>, vector<1x32xf32>
      %659 = vector.broadcast %658 : vector<1x32xf32> to vector<2x32xf32>
      %660 = arith.addf %657, %659 : vector<2x32xf32>
      %661 = math.tanh %660 : vector<2x32xf32>
      %c0_204 = arith.constant 0 : index
      %c0_205 = arith.constant 0 : index
      %662 = vector.load %arg10[%c0_204, %c0_205] : memref<2x32xf32, #tpu.memory_space<vmem>>, vector<2x32xf32>
      tpu.vector_store %arg10[%c0_204, %c0_205], %661 {strides = array<i32>} : memref<2x32xf32, #tpu.memory_space<vmem>>, vector<2x32xf32>,
    } else {
    }
    return
  }
  func.func @transform_0(%arg0: i32, %arg1: memref<16xi32, #tpu.memory_space<smem>>) -> (i32, i32) {
    %c0_i32 = arith.constant 0 : i32
    %c0_i32_0 = arith.constant 0 : i32
    %c0_i32_1 = arith.constant 0 : i32
    return %c0_i32, %c0_i32_0 : i32, i32
  }
  func.func @transform_1(%arg0: i32, %arg1: memref<16xi32, #tpu.memory_space<smem>>) -> (i32, i32) {
    %c0_i32 = arith.constant 0 : i32
    %c0_i32_0 = arith.constant 0 : i32
    %c0_i32_1 = arith.constant 0 : i32
    return %c0_i32, %c0_i32_0 : i32, i32
  }
  func.func @transform_2(%arg0: i32, %arg1: memref<16xi32, #tpu.memory_space<smem>>) -> (i32, i32) {
    %c0_i32 = arith.constant 0 : i32
    %c0_i32_0 = arith.constant 0 : i32
    %c0_i32_1 = arith.constant 0 : i32
    return %c0_i32, %c0_i32_0 : i32, i32
  }
  func.func @transform_3(%arg0: i32, %arg1: memref<16xi32, #tpu.memory_space<smem>>) -> (i32, i32) {
    %c0_i32 = arith.constant 0 : i32
    %c0_i32_0 = arith.constant 0 : i32
    %c0_i32_1 = arith.constant 0 : i32
    return %c0_i32, %c0_i32_0 : i32, i32
  }
  func.func @transform_4(%arg0: i32, %arg1: memref<16xi32, #tpu.memory_space<smem>>) -> (i32, i32) {
    %c0_i32 = arith.constant 0 : i32
    %c0_i32_0 = arith.constant 0 : i32
    %c0_i32_1 = arith.constant 0 : i32
    return %c0_i32, %c0_i32_0 : i32, i32
  }
  func.func @transform_5(%arg0: i32, %arg1: memref<16xi32, #tpu.memory_space<smem>>) -> (i32, i32) {
    %c0_i32 = arith.constant 0 : i32
    %c0_i32_0 = arith.constant 0 : i32
    %c0_i32_1 = arith.constant 0 : i32
    return %c0_i32, %c0_i32_0 : i32, i32
  }
  func.func @transform_6(%arg0: i32, %arg1: memref<16xi32, #tpu.memory_space<smem>>) -> (i32, i32) {
    %c0_i32 = arith.constant 0 : i32
    %c0_i32_0 = arith.constant 0 : i32
    %c0_i32_1 = arith.constant 0 : i32
    return %c0_i32, %c0_i32_0 : i32, i32
  }
  func.func @transform_7(%arg0: i32, %arg1: memref<16xi32, #tpu.memory_space<smem>>) -> (i32, i32, i32) {
    %c0_i32 = arith.constant 0 : i32
    %c0_i32_0 = arith.constant 0 : i32
    %c0_i32_1 = arith.constant 0 : i32
    %c0_i32_2 = arith.constant 0 : i32
    return %c0_i32, %c0_i32_0, %c0_i32_1 : i32, i32, i32
  }
  func.func @transform_8(%arg0: i32, %arg1: memref<16xi32, #tpu.memory_space<smem>>) -> (i32, i32) {
    %c0_i32 = arith.constant 0 : i32
    %c0_i32_0 = arith.constant 0 : i32
    %c0_i32_1 = arith.constant 0 : i32
    return %c0_i32, %c0_i32_0 : i32, i32
  }
}

</mosaic_0001>

<llo_original>
// kernel: tpu_custom_call.1
$region0: #{tpu_custom_call.1}
  #allocation0 [shape = 'u32[]', space=smem, size = 0x4, offset = 0x4, fixed_abs, tag = 'smem constant byte address 0x4 - core index']
  #allocation1 [shape = 'u32[144,128]{1,0:T(1,128)}', space=vmem, size = 0x12000, scoped, tag = 'internal scratch']
  #allocation2 [shape = 'f32[16,32]{1,0:T(8,128)}', space=vmem, size = 0x2000, scoped, tag = 'scratch operand']
  #allocation3 [shape = 'f32[2,32]{1,0:T(2,128)}', space=vmem, size = 0x400, scoped, tag = 'scratch operand']
  #allocation4 [shape = 's32[1]{0}', space=sflag, size = 0x4, scoped, tag = 'scoped memory for tpu_custom_call.1']
  #allocation5 [shape = 'u8[512]{0}', space=smem, size = 0x200, scoped, tag = 'prefetched SMEM operand 0']
  %s0 = inlined_call_operand.hbm [shape: s32[16], index: 0, kind: input, shape index: {}]
  %s1 = inlined_call_operand.vmem [shape: f32[64,32], index: 1, kind: input, shape index: {}]
  %s2 = inlined_call_operand.vmem [shape: f32[32,96], index: 2, kind: input, shape index: {}]
  %s3 = inlined_call_operand.vmem [shape: f32[1,96], index: 3, kind: input, shape index: {}]
  %s4 = inlined_call_operand.vmem [shape: f32[32,96], index: 4, kind: input, shape index: {}]
  %s5 = inlined_call_operand.vmem [shape: f32[1,96], index: 5, kind: input, shape index: {}]
  %s6 = inlined_call_operand.vmem [shape: f32[32,32], index: 6, kind: input, shape index: {}]
  %s7 = inlined_call_operand.vmem [shape: f32[1,32], index: 7, kind: input, shape index: {}]
  %s8 = inlined_call_operand.hbm [shape: f32[8,2,32], index: 8, kind: output, shape index: {0}]
  %s9 = inlined_call_operand.hbm [shape: f32[2,32], index: 9, kind: output, shape index: {1}]
  %10 = xla_tuple %s8, %s9
  %s11 = sld [smem:[#allocation0]]
  $region54: #{tpu_custom_call.1} parent=0
    _
  %s13 = ssub.s32 1, %s11
  %s14 = scalar_select 0, %s13, %s11
  %16 = dma.hbm_to_smem %s0, 16, [#allocation5], [#allocation4]
  %17 = dma.done [#allocation4], 16
  %18 = sfence
  $region1: #{tpu_custom_call.1} parent=0
    #allocation6 [shape = 'u8[8192]{0}', space=vmem, size = 0x2000, scoped, tag = 'output window, operand 0, single buffered']
    #allocation7 [shape = 's32[1]{0}', space=sflag, size = 0x4, scoped, tag = 'scoped memory for tpu_custom_call.1']
    #allocation8 [shape = 'u8[1024]{0}', space=vmem, size = 0x400, scoped, tag = 'output window, operand 1, single buffered']
    #allocation9 [shape = 's32[1]{0}', space=sflag, size = 0x4, scoped, tag = 'scoped memory for tpu_custom_call.1']
    %19 = vsyncpa [#allocation7], 0
    %20 = vsyncpa [#allocation9], 0
    // Predicated region
    $region2: #{tpu_custom_call.1} parent=1 // pred_check
      _
    $region3: #{tpu_custom_call.1} parent=1 // pred_check_branch
      %22 = sbr.rel (0) target = $region5
    $region4: #{tpu_custom_call.1} parent=1 // pred_region
      _
    $region5: #{tpu_custom_call.1} parent=1 // pred_fallthru
      _
    // Predicated region
    $region6: #{tpu_custom_call.1} parent=1 // pred_check
      _
    $region7: #{tpu_custom_call.1} parent=1 // pred_check_branch
      %24 = sbr.rel (0) target = $region9
    $region8: #{tpu_custom_call.1} parent=1 // pred_region
      _
    $region9: #{tpu_custom_call.1} parent=1 // pred_fallthru
      _
    // Predicated region
    $region10: #{tpu_custom_call.1} parent=1 // pred_check
      _
    $region11: #{tpu_custom_call.1} parent=1 // pred_check_branch
      %26 = sbr.rel (0) target = $region13
    $region12: #{tpu_custom_call.1} parent=1 // pred_region
      _
    $region13: #{tpu_custom_call.1} parent=1 // pred_fallthru
      _
    // Predicated region
    $region14: #{tpu_custom_call.1} parent=1 // pred_check
      _
    $region15: #{tpu_custom_call.1} parent=1 // pred_check_branch
      %28 = sbr.rel (0) target = $region17
    $region16: #{tpu_custom_call.1} parent=1 // pred_region
      _
    $region17: #{tpu_custom_call.1} parent=1 // pred_fallthru
      _
    // Predicated region
    $region18: #{tpu_custom_call.1} parent=1 // pred_check
      _
    $region19: #{tpu_custom_call.1} parent=1 // pred_check_branch
      %30 = sbr.rel (0) target = $region21
    $region20: #{tpu_custom_call.1} parent=1 // pred_region
      _
    $region21: #{tpu_custom_call.1} parent=1 // pred_fallthru
      _
    // Predicated region
    $region22: #{tpu_custom_call.1} parent=1 // pred_check
      _
    $region23: #{tpu_custom_call.1} parent=1 // pred_check_branch
      %32 = sbr.rel (0) target = $region25
    $region24: #{tpu_custom_call.1} parent=1 // pred_region
      _
    $region25: #{tpu_custom_call.1} parent=1 // pred_fallthru
      _
    // Predicated region
    $region26: #{tpu_custom_call.1} parent=1 // pred_check
      _
    $region27: #{tpu_custom_call.1} parent=1 // pred_check_branch
      %34 = sbr.rel (0) target = $region29
    $region28: #{tpu_custom_call.1} parent=1 // pred_region
      _
    $region29: #{tpu_custom_call.1} parent=1 // pred_fallthru
      _
    %p35 = scmp.eq.s32.totalorder 0, 0
    // Predicated region
    $region30: #{tpu_custom_call.1} parent=1 // pred_check
      %p36 = pneg %p35
    $region31: #{tpu_custom_call.1} parent=1 // pred_check_branch
      %38 = sbr.rel (%p36) target = $region33
    $region32: #{tpu_custom_call.1} parent=1 // pred_region
      %vm39 = vcmask 254976
      %40 = vst.msk [vmem:[#allocation3] sm:$0x3] %vm39, 0.0
    $region33: #{tpu_custom_call.1} parent=1 // pred_fallthru
      _
    %s41 = smul.u32 0, 16
    %s42 = sld [smem:[#allocation5 + %s41]]
    %s43 = scalar_lea.vmem %s1, %s42
    %v44 = vld [vmem:[%s43] sm:$0x1]
    %vm45 = vcmask 253952
    %46 = vst.msk [vmem:[#allocation2] sm:$0x1] %vm45, %v44
    %s47 = sadd.s32 %s41, 1
    %s48 = sld [smem:[#allocation5 + %s47]]
    %s49 = scalar_lea.vmem %s1, %s48
    %v50 = vld [vmem:[%s49] sm:$0x1]
    %51 = vst.msk [vmem:[#allocation2 + $0x1] sm:$0x1] %vm45, %v50
    %s52 = sadd.s32 %s41, 2
    %s53 = sld [smem:[#allocation5 + %s52]]
    %s54 = scalar_lea.vmem %s1, %s53
    %v55 = vld [vmem:[%s54] sm:$0x1]
    %56 = vst.msk [vmem:[#allocation2 + $0x2] sm:$0x1] %vm45, %v55
    %s57 = sadd.s32 %s41, 3
    %s58 = sld [smem:[#allocation5 + %s57]]
    %s59 = scalar_lea.vmem %s1, %s58
    %v60 = vld [vmem:[%s59] sm:$0x1]
    %61 = vst.msk [vmem:[#allocation2 + $0x3] sm:$0x1] %vm45, %v60
    %s62 = sadd.s32 %s41, 4
    %s63 = sld [smem:[#allocation5 + %s62]]
    %s64 = scalar_lea.vmem %s1, %s63
    %v65 = vld [vmem:[%s64] sm:$0x1]
    %66 = vst.msk [vmem:[#allocation2 + $0x4] sm:$0x1] %vm45, %v65
    %s67 = sadd.s32 %s41, 5
    %s68 = sld [smem:[#allocation5 + %s67]]
    %s69 = scalar_lea.vmem %s1, %s68
    %v70 = vld [vmem:[%s69] sm:$0x1]
    %71 = vst.msk [vmem:[#allocation2 + $0x5] sm:$0x1] %vm45, %v70
    %s72 = sadd.s32 %s41, 6
    %s73 = sld [smem:[#allocation5 + %s72]]
    %s74 = scalar_lea.vmem %s1, %s73
    %v75 = vld [vmem:[%s74] sm:$0x1]
    %76 = vst.msk [vmem:[#allocation2 + $0x6] sm:$0x1] %vm45, %v75
    %s77 = sadd.s32 %s41, 7
    %s78 = sld [smem:[#allocation5 + %s77]]
    %s79 = scalar_lea.vmem %s1, %s78
    %v80 = vld [vmem:[%s79] sm:$0x1]
    %81 = vst.msk [vmem:[#allocation2 + $0x7] sm:$0x1] %vm45, %v80
    %s82 = sadd.s32 %s41, 8
    %s83 = sld [smem:[#allocation5 + %s82]]
    %s84 = scalar_lea.vmem %s1, %s83
    %v85 = vld [vmem:[%s84] sm:$0x1]
    %86 = vst.msk [vmem:[#allocation2 + $0x8] sm:$0x1] %vm45, %v85
    %s87 = sadd.s32 %s41, 9
    %s88 = sld [smem:[#allocation5 + %s87]]
    %s89 = scalar_lea.vmem %s1, %s88
    %v90 = vld [vmem:[%s89] sm:$0x1]
    %91 = vst.msk [vmem:[#allocation2 + $0x9] sm:$0x1] %vm45, %v90
    %s92 = sadd.s32 %s41, 10
    %s93 = sld [smem:[#allocation5 + %s92]]
    %s94 = scalar_lea.vmem %s1, %s93
    %v95 = vld [vmem:[%s94] sm:$0x1]
    %96 = vst.msk [vmem:[#allocation2 + $0xa] sm:$0x1] %vm45, %v95
    %s97 = sadd.s32 %s41, 11
    %s98 = sld [smem:[#allocation5 + %s97]]
    %s99 = scalar_lea.vmem %s1, %s98
    %v100 = vld [vmem:[%s99] sm:$0x1]
    %101 = vst.msk [vmem:[#allocation2 + $0xb] sm:$0x1] %vm45, %v100
    %s102 = sadd.s32 %s41, 12
    %s103 = sld [smem:[#allocation5 + %s102]]
    %s104 = scalar_lea.vmem %s1, %s103
    %v105 = vld [vmem:[%s104] sm:$0x1]
    %106 = vst.msk [vmem:[#allocation2 + $0xc] sm:$0x1] %vm45, %v105
    %s107 = sadd.s32 %s41, 13
    %s108 = sld [smem:[#allocation5 + %s107]]
    %s109 = scalar_lea.vmem %s1, %s108
    %v110 = vld [vmem:[%s109] sm:$0x1]
    %111 = vst.msk [vmem:[#allocation2 + $0xd] sm:$0x1] %vm45, %v110
    %s112 = sadd.s32 %s41, 14
    %s113 = sld [smem:[#allocation5 + %s112]]
    %s114 = scalar_lea.vmem %s1, %s113
    %v115 = vld [vmem:[%s114] sm:$0x1]
    %116 = vst.msk [vmem:[#allocation2 + $0xe] sm:$0x1] %vm45, %v115
    %s117 = sadd.s32 %s41, 15
    %s118 = sld [smem:[#allocation5 + %s117]]
    %s119 = scalar_lea.vmem %s1, %s118
    %v120 = vld [vmem:[%s119] sm:$0x1]
    %121 = vst.msk [vmem:[#allocation2 + $0xf] sm:$0x1] %vm45, %v120
    %v122 = vld [vmem:[#allocation2] sm:$0xff]
    %v123 = vld [vmem:[#allocation2 + $0x8] sm:$0xff]
    %v124 = vld [vmem:[%s2] sm:$0xff]
    %v125 = vld [vmem:[%s2 + $0x8] sm:$0xff]
    %v126 = vld [vmem:[%s2 + $0x10] sm:$0xff]
    %v127 = vld [vmem:[%s2 + $0x18] sm:$0xff]
    %v128 = vld [vmem:[%s3] sm:$0x1]
    %v130 = vlaneseq
    %v131 = vshrl.u32 %v130, 7
    %v132 = vsub.s32 0, %v131
    %v133 = vrot.slane %v128, %v132
    %vm135 = vcmask 261120
    %v137 = vsel %vm135, %v122, 0
    %v140 = vsel %vm135, %v123, 0
    %142 = vmatprep.subr.mxu0 0.0
    %143 = vmatpush1.msra.mxu0 %v124
    %144 = vmatprep.subr.mxu0 0.0
    %145 = vmatpush1.msra.mxu0 %v125
    %146 = vmatprep.subr.mxu0 0.0
    %147 = vmatpush1.msra.mxu0 %v126
    %148 = vmatprep.subr.mxu0 0.0
    %149 = vmatpush1.msra.mxu0 %v127
    %150 = vmatprep.subr.mxu0 0.0
    %151 = vmatpush1.msra.mxu0 0.0
    %152 = vmatprep.subr.mxu0 0.0
    %153 = vmatpush1.msra.mxu0 0.0
    %154 = vmatprep.subr.mxu0 0.0
    %155 = vmatpush1.msra.mxu0 0.0
    %156 = vmatprep.subr.mxu0 0.0
    %157 = vmatpush1.msra.mxu0 0.0
    %158 = vmatprep.subr.mxu0 0.0
    %159 = vmatpush1.msra.mxu0 0.0
    %160 = vmatprep.subr.mxu0 0.0
    %161 = vmatpush1.msra.mxu0 0.0
    %162 = vmatprep.subr.mxu0 0.0
    %163 = vmatpush1.msra.mxu0 0.0
    %164 = vmatprep.subr.mxu0 0.0
    %165 = vmatpush1.msra.mxu0 0.0
    %166 = vmatprep.subr.mxu0 0.0
    %167 = vmatpush1.msra.mxu0 0.0
    %168 = vmatprep.subr.mxu0 0.0
    %169 = vmatpush1.msra.mxu0 0.0
    %170 = vmatprep.subr.mxu0 0.0
    %171 = vmatpush1.msra.mxu0 0.0
    %172 = vmatprep.subr.mxu0 0.0
    %173 = vmatpush1.msra.mxu0 0.0
    %174 = vmatprep.subr.mxu0 0.0
    %175 = vmatpush1.msra.mxu0 0.0
    %176 = vmatprep.subr.mxu0 0.0
    %177 = vmatpush1.msra.mxu0 0.0
    %178 = vmatprep.subr.mxu0 0.0
    %179 = vmatpush1.msra.mxu0 0.0
    %180 = vmatprep.subr.mxu0 0.0
    %181 = vmatpush1.msra.mxu0 0.0
    %182 = vmatprep.subr.mxu0 0.0
    %183 = vmatpush1.msra.mxu0 0.0
    %184 = vmatprep.subr.mxu0 0.0
    %185 = vmatpush1.msra.mxu0 0.0
    %186 = vmatprep.subr.mxu0 0.0
    %187 = vmatpush1.msra.mxu0 0.0
    %188 = vmatprep.subr.mxu0 0.0
    %189 = vmatpush1.msra.mxu0 0.0
    %190 = vmatprep.subr.mxu0 0.0
    %191 = vmatpush1.msra.mxu0 0.0
    %192 = vmatprep.subr.mxu0 0.0
    %193 = vmatpush1.msra.mxu0 0.0
    %194 = vmatprep.subr.mxu0 0.0
    %195 = vmatpush1.msra.mxu0 0.0
    %196 = vmatprep.subr.mxu0 0.0
    %197 = vmatpush1.msra.mxu0 0.0
    %198 = vmatprep.subr.mxu0 0.0
    %199 = vmatpush1.msra.mxu0 0.0
    %200 = vmatprep.subr.mxu0 0.0
    %201 = vmatpush1.msra.mxu0 0.0
    %202 = vmatprep.subr.mxu0 0.0
    %203 = vmatpush1.msra.mxu0 0.0
    %204 = vmatprep.subr.mxu0 0.0
    %205 = vmatpush1.msra.mxu0 0.0
    %206 = vmatprep.mubr.f32.mxu0 0.0
    %207 = vmatmul.mubr.f32.gmra.mrb[0].mxu0 %v137
    %v208 = vpop.f32.mrb[0].mxu0
    %v209 = vadd.f32 %v133, %v208
    %v210 = vpop.f32.mrb[0].mxu0
    %211 = vmatprep.mubr.f32.mxu0 0.0
    %212 = vmatmul.mubr.f32.gmra.mrb[0].mxu0 %v140
    %v213 = vpop.f32.mrb[0].mxu0
    %v214 = vadd.f32 %v133, %v213
    %v215 = vpop.f32.mrb[0].mxu0
    %216 = vdwg.mxu0
    %v217 = vld [vmem:[%s4] sm:$0xff]
    %v218 = vld [vmem:[%s4 + $0x8] sm:$0xff]
    %v219 = vld [vmem:[%s4 + $0x10] sm:$0xff]
    %v220 = vld [vmem:[%s4 + $0x18] sm:$0xff]
    %v221 = vld [vmem:[%s5] sm:$0x1]
    %v222 = vld [vmem:[#allocation3] sm:$0x3]
    %v224 = vlaneseq
    %v225 = vshrl.u32 %v224, 7
    %v226 = vsub.s32 0, %v225
    %v227 = vrot.slane %v221, %v226
    %v230 = vsel %vm135, %v222, 0
    %232 = vmatprep.subr.mxu0 0.0
    %233 = vmatpush1.msra.mxu0 %v217
    %234 = vmatprep.subr.mxu0 0.0
    %235 = vmatpush1.msra.mxu0 %v218
    %236 = vmatprep.subr.mxu0 0.0
    %237 = vmatpush1.msra.mxu0 %v219
    %238 = vmatprep.subr.mxu0 0.0
    %239 = vmatpush1.msra.mxu0 %v220
    %240 = vmatprep.subr.mxu0 0.0
    %241 = vmatpush1.msra.mxu0 0.0
    %242 = vmatprep.subr.mxu0 0.0
    %243 = vmatpush1.msra.mxu0 0.0
    %244 = vmatprep.subr.mxu0 0.0
    %245 = vmatpush1.msra.mxu0 0.0
    %246 = vmatprep.subr.mxu0 0.0
    %247 = vmatpush1.msra.mxu0 0.0
    %248 = vmatprep.subr.mxu0 0.0
    %249 = vmatpush1.msra.mxu0 0.0
    %250 = vmatprep.subr.mxu0 0.0
    %251 = vmatpush1.msra.mxu0 0.0
    %252 = vmatprep.subr.mxu0 0.0
    %253 = vmatpush1.msra.mxu0 0.0
    %254 = vmatprep.subr.mxu0 0.0
    %255 = vmatpush1.msra.mxu0 0.0
    %256 = vmatprep.subr.mxu0 0.0
    %257 = vmatpush1.msra.mxu0 0.0
    %258 = vmatprep.subr.mxu0 0.0
    %259 = vmatpush1.msra.mxu0 0.0
    %260 = vmatprep.subr.mxu0 0.0
    %261 = vmatpush1.msra.mxu0 0.0
    %262 = vmatprep.subr.mxu0 0.0
    %263 = vmatpush1.msra.mxu0 0.0
    %264 = vmatprep.subr.mxu0 0.0
    %265 = vmatpush1.msra.mxu0 0.0
    %266 = vmatprep.subr.mxu0 0.0
    %267 = vmatpush1.msra.mxu0 0.0
    %268 = vmatprep.subr.mxu0 0.0
    %269 = vmatpush1.msra.mxu0 0.0
    %270 = vmatprep.subr.mxu0 0.0
    %271 = vmatpush1.msra.mxu0 0.0
    %272 = vmatprep.subr.mxu0 0.0
    %273 = vmatpush1.msra.mxu0 0.0
    %274 = vmatprep.subr.mxu0 0.0
    %275 = vmatpush1.msra.mxu0 0.0
    %276 = vmatprep.subr.mxu0 0.0
    %277 = vmatpush1.msra.mxu0 0.0
    %278 = vmatprep.subr.mxu0 0.0
    %279 = vmatpush1.msra.mxu0 0.0
    %280 = vmatprep.subr.mxu0 0.0
    %281 = vmatpush1.msra.mxu0 0.0
    %282 = vmatprep.subr.mxu0 0.0
    %283 = vmatpush1.msra.mxu0 0.0
    %284 = vmatprep.subr.mxu0 0.0
    %285 = vmatpush1.msra.mxu0 0.0
    %286 = vmatprep.subr.mxu0 0.0
    %287 = vmatpush1.msra.mxu0 0.0
    %288 = vmatprep.subr.mxu0 0.0
    %289 = vmatpush1.msra.mxu0 0.0
    %290 = vmatprep.subr.mxu0 0.0
    %291 = vmatpush1.msra.mxu0 0.0
    %292 = vmatprep.subr.mxu0 0.0
    %293 = vmatpush1.msra.mxu0 0.0
    %294 = vmatprep.subr.mxu0 0.0
    %295 = vmatpush1.msra.mxu0 0.0
    %296 = vmatprep.mubr.f32.mxu0 0.0
    %297 = vmatmul.mubr.f32.gmra.mrb[0].mxu0 %v230
    %v298 = vpop.f32.mrb[0].mxu0
    %v299 = vadd.f32 %v227, %v298
    %v300 = vpop.f32.mrb[0].mxu0
    %301 = vdwg.mxu0
    %v302 = vadd.f32 %v209, %v299
    %v303 = vxor.u32 %v302, 2147483648
    %v304 = vmul.f32 %v303, 1.442695
    %v305 = vpow.pop %v304
    %v306 = vadd.f32 %v305, 1.0
    %v307 = vrcp.pop %v306
    %v308 = vmul.f32 1.0, %v307
    %310 = vrot.lane.b32.xlu0 %v299, 96
    %v311 = vpop.permute.xlu0 %310
    %v313 = vmul.f32 %v308, %v311
    %315 = vrot.lane.b32.xlu0 %v313, 32
    %v316 = vpop.permute.xlu0 %315
    %v318 = vadd.f32 %v209, %v316
    %v319 = vtanh.pop %v318
    %v320 = vsub.f32 1.0, %v308
    %322 = vrot.lane.b32.xlu0 %v319, 112
    %v323 = vpop.permute.xlu0 %322
    %v325 = vmul.f32 %v320, %v323
    %326 = vrot.lane.b32.xlu0 %v222, 16
    %v327 = vpop.permute.xlu0 %326
    %v329 = vmul.f32 %v308, %v327
    %v330 = vadd.f32 %v325, %v329
    %v331 = vrot.slane %v299, 2
    %v333 = vadd.f32 %v214, %v331
    %v334 = vxor.u32 %v333, 2147483648
    %v335 = vmul.f32 %v334, 1.442695
    %v336 = vpow.pop %v335
    %v337 = vadd.f32 %v336, 1.0
    %v338 = vrcp.pop %v337
    %v339 = vmul.f32 1.0, %v338
    %340 = vrot.lane.b32.xlu0 %v331, 96
    %v341 = vpop.permute.xlu0 %340
    %v343 = vmul.f32 %v339, %v341
    %345 = vrot.lane.b32.xlu0 %v343, 32
    %v346 = vpop.permute.xlu0 %345
    %v348 = vadd.f32 %v214, %v346
    %v349 = vtanh.pop %v348
    %v350 = vsub.f32 1.0, %v339
    %352 = vrot.lane.b32.xlu0 %v349, 112
    %v353 = vpop.permute.xlu0 %352
    %v355 = vmul.f32 %v350, %v353
    %v356 = vrot.slane %v222, 2
    %357 = vrot.lane.b32.xlu0 %v356, 48
    %v358 = vpop.permute.xlu0 %357
    %v360 = vmul.f32 %v339, %v358
    %v361 = vadd.f32 %v355, %v360
    %363 = vrot.lane.b32.xlu0 %v330, 112
    %v364 = vpop.permute.xlu0 %363
    %vm366 = vcmask 123904
    %367 = vst.msk [vmem:[#allocation3] sm:$0x3] %vm366, %v364
    %369 = vrot.lane.b32.xlu0 %v361, 80
    %v370 = vpop.permute.xlu0 %369
    %vm372 = vcmask 261254
    %373 = vst.msk [vmem:[#allocation3 - $0x6] sm:$0xc0] %vm372, %v370
    %374 = vst.msk [vmem:[#allocation6] sm:$0x3] %vm366, %v364
    %s375 = scalar_lea.vmem [#allocation6], 14
    %376 = vst.msk [vmem:[%s375 - $0x6] sm:$0xc0] %vm372, %v370
    %v377 = vld [vmem:[#allocation3] sm:$0x3]
    %v379 = vsel %vm135, %v377, 0
    %381 = vmatprep.subr.mxu0 0.0
    %382 = vmatpush1.msra.mxu0 %v217
    %383 = vmatprep.subr.mxu0 0.0
    %384 = vmatpush1.msra.mxu0 %v218
    %385 = vmatprep.subr.mxu0 0.0
    %386 = vmatpush1.msra.mxu0 %v219
    %387 = vmatprep.subr.mxu0 0.0
    %388 = vmatpush1.msra.mxu0 %v220
    %389 = vmatprep.subr.mxu0 0.0
    %390 = vmatpush1.msra.mxu0 0.0
    %391 = vmatprep.subr.mxu0 0.0
    %392 = vmatpush1.msra.mxu0 0.0
    %393 = vmatprep.subr.mxu0 0.0
    %394 = vmatpush1.msra.mxu0 0.0
    %395 = vmatprep.subr.mxu0 0.0
    %396 = vmatpush1.msra.mxu0 0.0
    %397 = vmatprep.subr.mxu0 0.0
    %398 = vmatpush1.msra.mxu0 0.0
    %399 = vmatprep.subr.mxu0 0.0
    %400 = vmatpush1.msra.mxu0 0.0
    %401 = vmatprep.subr.mxu0 0.0
    %402 = vmatpush1.msra.mxu0 0.0
    %403 = vmatprep.subr.mxu0 0.0
    %404 = vmatpush1.msra.mxu0 0.0
    %405 = vmatprep.subr.mxu0 0.0
    %406 = vmatpush1.msra.mxu0 0.0
    %407 = vmatprep.subr.mxu0 0.0
    %408 = vmatpush1.msra.mxu0 0.0
    %409 = vmatprep.subr.mxu0 0.0
    %410 = vmatpush1.msra.mxu0 0.0
    %411 = vmatprep.subr.mxu0 0.0
    %412 = vmatpush1.msra.mxu0 0.0
    %413 = vmatprep.subr.mxu0 0.0
    %414 = vmatpush1.msra.mxu0 0.0
    %415 = vmatprep.subr.mxu0 0.0
    %416 = vmatpush1.msra.mxu0 0.0
    %417 = vmatprep.subr.mxu0 0.0
    %418 = vmatpush1.msra.mxu0 0.0
    %419 = vmatprep.subr.mxu0 0.0
    %420 = vmatpush1.msra.mxu0 0.0
    %421 = vmatprep.subr.mxu0 0.0
    %422 = vmatpush1.msra.mxu0 0.0
    %423 = vmatprep.subr.mxu0 0.0
    %424 = vmatpush1.msra.mxu0 0.0
    %425 = vmatprep.subr.mxu0 0.0
    %426 = vmatpush1.msra.mxu0 0.0
    %427 = vmatprep.subr.mxu0 0.0
    %428 = vmatpush1.msra.mxu0 0.0
    %429 = vmatprep.subr.mxu0 0.0
    %430 = vmatpush1.msra.mxu0 0.0
    %431 = vmatprep.subr.mxu0 0.0
    %432 = vmatpush1.msra.mxu0 0.0
    %433 = vmatprep.subr.mxu0 0.0
    %434 = vmatpush1.msra.mxu0 0.0
    %435 = vmatprep.subr.mxu0 0.0
    %436 = vmatpush1.msra.mxu0 0.0
    %437 = vmatprep.subr.mxu0 0.0
    %438 = vmatpush1.msra.mxu0 0.0
    %439 = vmatprep.subr.mxu0 0.0
    %440 = vmatpush1.msra.mxu0 0.0
    %441 = vmatprep.subr.mxu0 0.0
    %442 = vmatpush1.msra.mxu0 0.0
    %443 = vmatprep.subr.mxu0 0.0
    %444 = vmatpush1.msra.mxu0 0.0
    %445 = vmatprep.mubr.f32.mxu0 0.0
    %446 = vmatmul.mubr.f32.gmra.mrb[0].mxu0 %v379
    %v447 = vpop.f32.mrb[0].mxu0
    %v448 = vadd.f32 %v227, %v447
    %v449 = vpop.f32.mrb[0].mxu0
    %450 = vdwg.mxu0
    %v452 = vrot.slane %v448, 6
    %v454 = vadd.f32 %v209, %v452
    %v455 = vxor.u32 %v454, 2147483648
    %v456 = vmul.f32 %v455, 1.442695
    %v457 = vpow.pop %v456
    %v458 = vadd.f32 %v457, 1.0
    %v459 = vrcp.pop %v458
    %v460 = vmul.f32 1.0, %v459
    %461 = vrot.lane.b32.xlu0 %v452, 96
    %v462 = vpop.permute.xlu0 %461
    %v464 = vmul.f32 %v460, %v462
    %466 = vrot.lane.b32.xlu0 %v464, 32
    %v467 = vpop.permute.xlu0 %466
    %v469 = vadd.f32 %v209, %v467
    %v470 = vtanh.pop %v469
    %v471 = vsub.f32 1.0, %v460
    %473 = vrot.lane.b32.xlu0 %v470, 112
    %v474 = vpop.permute.xlu0 %473
    %v476 = vmul.f32 %v471, %v474
    %v477 = vrot.slane %v377, 6
    %478 = vrot.lane.b32.xlu0 %v477, 16
    %v479 = vpop.permute.xlu0 %478
    %v481 = vmul.f32 %v460, %v479
    %v482 = vadd.f32 %v476, %v481
    %v483 = vrot.slane %v448, 4
    %v485 = vadd.f32 %v214, %v483
    %v486 = vxor.u32 %v485, 2147483648
    %v487 = vmul.f32 %v486, 1.442695
    %v488 = vpow.pop %v487
    %v489 = vadd.f32 %v488, 1.0
    %v490 = vrcp.pop %v489
    %v491 = vmul.f32 1.0, %v490
    %492 = vrot.lane.b32.xlu0 %v483, 96
    %v493 = vpop.permute.xlu0 %492
    %v495 = vmul.f32 %v491, %v493
    %497 = vrot.lane.b32.xlu0 %v495, 32
    %v498 = vpop.permute.xlu0 %497
    %v500 = vadd.f32 %v214, %v498
    %v501 = vtanh.pop %v500
    %v502 = vsub.f32 1.0, %v491
    %504 = vrot.lane.b32.xlu0 %v501, 112
    %v505 = vpop.permute.xlu0 %504
    %v507 = vmul.f32 %v502, %v505
    %v508 = vrot.slane %v377, 4
    %509 = vrot.lane.b32.xlu0 %v508, 48
    %v510 = vpop.permute.xlu0 %509
    %v512 = vmul.f32 %v491, %v510
    %v513 = vadd.f32 %v507, %v512
    %515 = vrot.lane.b32.xlu0 %v482, 112
    %v516 = vpop.permute.xlu0 %515
    %vm518 = vcmask 125954
    %519 = vst.msk [vmem:[#allocation3 - $0x2] sm:$0xc] %vm518, %v516
    %521 = vrot.lane.b32.xlu0 %v513, 80
    %v522 = vpop.permute.xlu0 %521
    %vm524 = vcmask 259204
    %525 = vst.msk [vmem:[#allocation3 - $0x4] sm:$0x30] %vm524, %v522
    %s526 = scalar_lea.vmem [#allocation6], 2
    %527 = vst.msk [vmem:[%s526 - $0x2] sm:$0xc] %vm518, %v516
    %s528 = scalar_lea.vmem [#allocation6], 12
    %529 = vst.msk [vmem:[%s528 - $0x4] sm:$0x30] %vm524, %v522
    %v530 = vld [vmem:[#allocation3] sm:$0x3]
    %v532 = vsel %vm135, %v530, 0
    %534 = vmatprep.subr.mxu0 0.0
    %535 = vmatpush1.msra.mxu0 %v217
    %536 = vmatprep.subr.mxu0 0.0
    %537 = vmatpush1.msra.mxu0 %v218
    %538 = vmatprep.subr.mxu0 0.0
    %539 = vmatpush1.msra.mxu0 %v219
    %540 = vmatprep.subr.mxu0 0.0
    %541 = vmatpush1.msra.mxu0 %v220
    %542 = vmatprep.subr.mxu0 0.0
    %543 = vmatpush1.msra.mxu0 0.0
    %544 = vmatprep.subr.mxu0 0.0
    %545 = vmatpush1.msra.mxu0 0.0
    %546 = vmatprep.subr.mxu0 0.0
    %547 = vmatpush1.msra.mxu0 0.0
    %548 = vmatprep.subr.mxu0 0.0
    %549 = vmatpush1.msra.mxu0 0.0
    %550 = vmatprep.subr.mxu0 0.0
    %551 = vmatpush1.msra.mxu0 0.0
    %552 = vmatprep.subr.mxu0 0.0
    %553 = vmatpush1.msra.mxu0 0.0
    %554 = vmatprep.subr.mxu0 0.0
    %555 = vmatpush1.msra.mxu0 0.0
    %556 = vmatprep.subr.mxu0 0.0
    %557 = vmatpush1.msra.mxu0 0.0
    %558 = vmatprep.subr.mxu0 0.0
    %559 = vmatpush1.msra.mxu0 0.0
    %560 = vmatprep.subr.mxu0 0.0
    %561 = vmatpush1.msra.mxu0 0.0
    %562 = vmatprep.subr.mxu0 0.0
    %563 = vmatpush1.msra.mxu0 0.0
    %564 = vmatprep.subr.mxu0 0.0
    %565 = vmatpush1.msra.mxu0 0.0
    %566 = vmatprep.subr.mxu0 0.0
    %567 = vmatpush1.msra.mxu0 0.0
    %568 = vmatprep.subr.mxu0 0.0
    %569 = vmatpush1.msra.mxu0 0.0
    %570 = vmatprep.subr.mxu0 0.0
    %571 = vmatpush1.msra.mxu0 0.0
    %572 = vmatprep.subr.mxu0 0.0
    %573 = vmatpush1.msra.mxu0 0.0
    %574 = vmatprep.subr.mxu0 0.0
    %575 = vmatpush1.msra.mxu0 0.0
    %576 = vmatprep.subr.mxu0 0.0
    %577 = vmatpush1.msra.mxu0 0.0
    %578 = vmatprep.subr.mxu0 0.0
    %579 = vmatpush1.msra.mxu0 0.0
    %580 = vmatprep.subr.mxu0 0.0
    %581 = vmatpush1.msra.mxu0 0.0
    %582 = vmatprep.subr.mxu0 0.0
    %583 = vmatpush1.msra.mxu0 0.0
    %584 = vmatprep.subr.mxu0 0.0
    %585 = vmatpush1.msra.mxu0 0.0
    %586 = vmatprep.subr.mxu0 0.0
    %587 = vmatpush1.msra.mxu0 0.0
    %588 = vmatprep.subr.mxu0 0.0
    %589 = vmatpush1.msra.mxu0 0.0
    %590 = vmatprep.subr.mxu0 0.0
    %591 = vmatpush1.msra.mxu0 0.0
    %592 = vmatprep.subr.mxu0 0.0
    %593 = vmatpush1.msra.mxu0 0.0
    %594 = vmatprep.subr.mxu0 0.0
    %595 = vmatpush1.msra.mxu0 0.0
    %596 = vmatprep.subr.mxu0 0.0
    %597 = vmatpush1.msra.mxu0 0.0
    %598 = vmatprep.mubr.f32.mxu0 0.0
    %599 = vmatmul.mubr.f32.gmra.mrb[0].mxu0 %v532
    %v600 = vpop.f32.mrb[0].mxu0
    %v601 = vadd.f32 %v227, %v600
    %v602 = vpop.f32.mrb[0].mxu0
    %603 = vdwg.mxu0
    %v605 = vrot.slane %v601, 4
    %v607 = vadd.f32 %v209, %v605
    %v608 = vxor.u32 %v607, 2147483648
    %v609 = vmul.f32 %v608, 1.442695
    %v610 = vpow.pop %v609
    %v611 = vadd.f32 %v610, 1.0
    %v612 = vrcp.pop %v611
    %v613 = vmul.f32 1.0, %v612
    %614 = vrot.lane.b32.xlu0 %v605, 96
    %v615 = vpop.permute.xlu0 %614
    %v617 = vmul.f32 %v613, %v615
    %619 = vrot.lane.b32.xlu0 %v617, 32
    %v620 = vpop.permute.xlu0 %619
    %v622 = vadd.f32 %v209, %v620
    %v623 = vtanh.pop %v622
    %v624 = vsub.f32 1.0, %v613
    %626 = vrot.lane.b32.xlu0 %v623, 112
    %v627 = vpop.permute.xlu0 %626
    %v629 = vmul.f32 %v624, %v627
    %v630 = vrot.slane %v530, 4
    %631 = vrot.lane.b32.xlu0 %v630, 16
    %v632 = vpop.permute.xlu0 %631
    %v634 = vmul.f32 %v613, %v632
    %v635 = vadd.f32 %v629, %v634
    %v636 = vrot.slane %v601, 6
    %v638 = vadd.f32 %v214, %v636
    %v639 = vxor.u32 %v638, 2147483648
    %v640 = vmul.f32 %v639, 1.442695
    %v641 = vpow.pop %v640
    %v642 = vadd.f32 %v641, 1.0
    %v643 = vrcp.pop %v642
    %v644 = vmul.f32 1.0, %v643
    %645 = vrot.lane.b32.xlu0 %v636, 96
    %v646 = vpop.permute.xlu0 %645
    %v648 = vmul.f32 %v644, %v646
    %650 = vrot.lane.b32.xlu0 %v648, 32
    %v651 = vpop.permute.xlu0 %650
    %v653 = vadd.f32 %v214, %v651
    %v654 = vtanh.pop %v653
    %v655 = vsub.f32 1.0, %v644
    %657 = vrot.lane.b32.xlu0 %v654, 112
    %v658 = vpop.permute.xlu0 %657
    %v660 = vmul.f32 %v655, %v658
    %v661 = vrot.slane %v530, 6
    %662 = vrot.lane.b32.xlu0 %v661, 48
    %v663 = vpop.permute.xlu0 %662
    %v665 = vmul.f32 %v644, %v663
    %v666 = vadd.f32 %v660, %v665
    %668 = vrot.lane.b32.xlu0 %v635, 112
    %v669 = vpop.permute.xlu0 %668
    %vm671 = vcmask 128004
    %672 = vst.msk [vmem:[#allocation3 - $0x4] sm:$0x30] %vm671, %v669
    %674 = vrot.lane.b32.xlu0 %v666, 80
    %v675 = vpop.permute.xlu0 %674
    %vm677 = vcmask 257154
    %678 = vst.msk [vmem:[#allocation3 - $0x2] sm:$0xc] %vm677, %v675
    %s679 = scalar_lea.vmem [#allocation6], 4
    %680 = vst.msk [vmem:[%s679 - $0x4] sm:$0x30] %vm671, %v669
    %s681 = scalar_lea.vmem [#allocation6], 10
    %682 = vst.msk [vmem:[%s681 - $0x2] sm:$0xc] %vm677, %v675
    %v683 = vld [vmem:[#allocation3] sm:$0x3]
    %v685 = vsel %vm135, %v683, 0
    %687 = vmatprep.subr.mxu0 0.0
    %688 = vmatpush1.msra.mxu0 %v217
    %689 = vmatprep.subr.mxu0 0.0
    %690 = vmatpush1.msra.mxu0 %v218
    %691 = vmatprep.subr.mxu0 0.0
    %692 = vmatpush1.msra.mxu0 %v219
    %693 = vmatprep.subr.mxu0 0.0
    %694 = vmatpush1.msra.mxu0 %v220
    %695 = vmatprep.subr.mxu0 0.0
    %696 = vmatpush1.msra.mxu0 0.0
    %697 = vmatprep.subr.mxu0 0.0
    %698 = vmatpush1.msra.mxu0 0.0
    %699 = vmatprep.subr.mxu0 0.0
    %700 = vmatpush1.msra.mxu0 0.0
    %701 = vmatprep.subr.mxu0 0.0
    %702 = vmatpush1.msra.mxu0 0.0
    %703 = vmatprep.subr.mxu0 0.0
    %704 = vmatpush1.msra.mxu0 0.0
    %705 = vmatprep.subr.mxu0 0.0
    %706 = vmatpush1.msra.mxu0 0.0
    %707 = vmatprep.subr.mxu0 0.0
    %708 = vmatpush1.msra.mxu0 0.0
    %709 = vmatprep.subr.mxu0 0.0
    %710 = vmatpush1.msra.mxu0 0.0
    %711 = vmatprep.subr.mxu0 0.0
    %712 = vmatpush1.msra.mxu0 0.0
    %713 = vmatprep.subr.mxu0 0.0
    %714 = vmatpush1.msra.mxu0 0.0
    %715 = vmatprep.subr.mxu0 0.0
    %716 = vmatpush1.msra.mxu0 0.0
    %717 = vmatprep.subr.mxu0 0.0
    %718 = vmatpush1.msra.mxu0 0.0
    %719 = vmatprep.subr.mxu0 0.0
    %720 = vmatpush1.msra.mxu0 0.0
    %721 = vmatprep.subr.mxu0 0.0
    %722 = vmatpush1.msra.mxu0 0.0
    %723 = vmatprep.subr.mxu0 0.0
    %724 = vmatpush1.msra.mxu0 0.0
    %725 = vmatprep.subr.mxu0 0.0
    %726 = vmatpush1.msra.mxu0 0.0
    %727 = vmatprep.subr.mxu0 0.0
    %728 = vmatpush1.msra.mxu0 0.0
    %729 = vmatprep.subr.mxu0 0.0
    %730 = vmatpush1.msra.mxu0 0.0
    %731 = vmatprep.subr.mxu0 0.0
    %732 = vmatpush1.msra.mxu0 0.0
    %733 = vmatprep.subr.mxu0 0.0
    %734 = vmatpush1.msra.mxu0 0.0
    %735 = vmatprep.subr.mxu0 0.0
    %736 = vmatpush1.msra.mxu0 0.0
    %737 = vmatprep.subr.mxu0 0.0
    %738 = vmatpush1.msra.mxu0 0.0
    %739 = vmatprep.subr.mxu0 0.0
    %740 = vmatpush1.msra.mxu0 0.0
    %741 = vmatprep.subr.mxu0 0.0
    %742 = vmatpush1.msra.mxu0 0.0
    %743 = vmatprep.subr.mxu0 0.0
    %744 = vmatpush1.msra.mxu0 0.0
    %745 = vmatprep.subr.mxu0 0.0
    %746 = vmatpush1.msra.mxu0 0.0
    %747 = vmatprep.subr.mxu0 0.0
    %748 = vmatpush1.msra.mxu0 0.0
    %749 = vmatprep.subr.mxu0 0.0
    %750 = vmatpush1.msra.mxu0 0.0
    %751 = vmatprep.mubr.f32.mxu0 0.0
    %752 = vmatmul.mubr.f32.gmra.mrb[0].mxu0 %v685
    %v753 = vpop.f32.mrb[0].mxu0
    %v754 = vadd.f32 %v227, %v753
    %v755 = vpop.f32.mrb[0].mxu0
    %756 = vdwg.mxu0
    %v758 = vrot.slane %v754, 2
    %v760 = vadd.f32 %v209, %v758
    %v761 = vxor.u32 %v760, 2147483648
    %v762 = vmul.f32 %v761, 1.442695
    %v763 = vpow.pop %v762
    %v764 = vadd.f32 %v763, 1.0
    %v765 = vrcp.pop %v764
    %v766 = vmul.f32 1.0, %v765
    %767 = vrot.lane.b32.xlu0 %v758, 96
    %v768 = vpop.permute.xlu0 %767
    %v770 = vmul.f32 %v766, %v768
    %772 = vrot.lane.b32.xlu0 %v770, 32
    %v773 = vpop.permute.xlu0 %772
    %v775 = vadd.f32 %v209, %v773
    %v776 = vtanh.pop %v775
    %v777 = vsub.f32 1.0, %v766
    %779 = vrot.lane.b32.xlu0 %v776, 112
    %v780 = vpop.permute.xlu0 %779
    %v782 = vmul.f32 %v777, %v780
    %v783 = vrot.slane %v683, 2
    %784 = vrot.lane.b32.xlu0 %v783, 16
    %v785 = vpop.permute.xlu0 %784
    %v787 = vmul.f32 %v766, %v785
    %v788 = vadd.f32 %v782, %v787
    %v789 = vadd.f32 %v214, %v754
    %v790 = vxor.u32 %v789, 2147483648
    %v791 = vmul.f32 %v790, 1.442695
    %v792 = vpow.pop %v791
    %v793 = vadd.f32 %v792, 1.0
    %v794 = vrcp.pop %v793
    %v795 = vmul.f32 1.0, %v794
    %796 = vrot.lane.b32.xlu0 %v754, 96
    %v797 = vpop.permute.xlu0 %796
    %v799 = vmul.f32 %v795, %v797
    %801 = vrot.lane.b32.xlu0 %v799, 32
    %v802 = vpop.permute.xlu0 %801
    %v804 = vadd.f32 %v214, %v802
    %v805 = vtanh.pop %v804
    %v806 = vsub.f32 1.0, %v795
    %808 = vrot.lane.b32.xlu0 %v805, 112
    %v809 = vpop.permute.xlu0 %808
    %v811 = vmul.f32 %v806, %v809
    %812 = vrot.lane.b32.xlu0 %v683, 48
    %v813 = vpop.permute.xlu0 %812
    %v815 = vmul.f32 %v795, %v813
    %v816 = vadd.f32 %v811, %v815
    %818 = vrot.lane.b32.xlu0 %v788, 112
    %v819 = vpop.permute.xlu0 %818
    %vm821 = vcmask 130054
    %822 = vst.msk [vmem:[#allocation3 - $0x6] sm:$0xc0] %vm821, %v819
    %824 = vrot.lane.b32.xlu0 %v816, 80
    %v825 = vpop.permute.xlu0 %824
    %vm827 = vcmask 255104
    %828 = vst.msk [vmem:[#allocation3] sm:$0x3] %vm827, %v825
    %s829 = scalar_lea.vmem [#allocation6], 6
    %830 = vst.msk [vmem:[%s829 - $0x6] sm:$0xc0] %vm821, %v819
    %s831 = scalar_lea.vmem [#allocation6], 8
    %832 = vst.msk [vmem:[%s831] sm:$0x3] %vm827, %v825
    %v833 = vld [vmem:[#allocation3] sm:$0x3]
    %v835 = vsel %vm135, %v833, 0
    %837 = vmatprep.subr.mxu0 0.0
    %838 = vmatpush1.msra.mxu0 %v217
    %839 = vmatprep.subr.mxu0 0.0
    %840 = vmatpush1.msra.mxu0 %v218
    %841 = vmatprep.subr.mxu0 0.0
    %842 = vmatpush1.msra.mxu0 %v219
    %843 = vmatprep.subr.mxu0 0.0
    %844 = vmatpush1.msra.mxu0 %v220
    %845 = vmatprep.subr.mxu0 0.0
    %846 = vmatpush1.msra.mxu0 0.0
    %847 = vmatprep.subr.mxu0 0.0
    %848 = vmatpush1.msra.mxu0 0.0
    %849 = vmatprep.subr.mxu0 0.0
    %850 = vmatpush1.msra.mxu0 0.0
    %851 = vmatprep.subr.mxu0 0.0
    %852 = vmatpush1.msra.mxu0 0.0
    %853 = vmatprep.subr.mxu0 0.0
    %854 = vmatpush1.msra.mxu0 0.0
    %855 = vmatprep.subr.mxu0 0.0
    %856 = vmatpush1.msra.mxu0 0.0
    %857 = vmatprep.subr.mxu0 0.0
    %858 = vmatpush1.msra.mxu0 0.0
    %859 = vmatprep.subr.mxu0 0.0
    %860 = vmatpush1.msra.mxu0 0.0
    %861 = vmatprep.subr.mxu0 0.0
    %862 = vmatpush1.msra.mxu0 0.0
    %863 = vmatprep.subr.mxu0 0.0
    %864 = vmatpush1.msra.mxu0 0.0
    %865 = vmatprep.subr.mxu0 0.0
    %866 = vmatpush1.msra.mxu0 0.0
    %867 = vmatprep.subr.mxu0 0.0
    %868 = vmatpush1.msra.mxu0 0.0
    %869 = vmatprep.subr.mxu0 0.0
    %870 = vmatpush1.msra.mxu0 0.0
    %871 = vmatprep.subr.mxu0 0.0
    %872 = vmatpush1.msra.mxu0 0.0
    %873 = vmatprep.subr.mxu0 0.0
    %874 = vmatpush1.msra.mxu0 0.0
    %875 = vmatprep.subr.mxu0 0.0
    %876 = vmatpush1.msra.mxu0 0.0
    %877 = vmatprep.subr.mxu0 0.0
    %878 = vmatpush1.msra.mxu0 0.0
    %879 = vmatprep.subr.mxu0 0.0
    %880 = vmatpush1.msra.mxu0 0.0
    %881 = vmatprep.subr.mxu0 0.0
    %882 = vmatpush1.msra.mxu0 0.0
    %883 = vmatprep.subr.mxu0 0.0
    %884 = vmatpush1.msra.mxu0 0.0
    %885 = vmatprep.subr.mxu0 0.0
    %886 = vmatpush1.msra.mxu0 0.0
    %887 = vmatprep.subr.mxu0 0.0
    %888 = vmatpush1.msra.mxu0 0.0
    %889 = vmatprep.subr.mxu0 0.0
    %890 = vmatpush1.msra.mxu0 0.0
    %891 = vmatprep.subr.mxu0 0.0
    %892 = vmatpush1.msra.mxu0 0.0
    %893 = vmatprep.subr.mxu0 0.0
    %894 = vmatpush1.msra.mxu0 0.0
    %895 = vmatprep.subr.mxu0 0.0
    %896 = vmatpush1.msra.mxu0 0.0
    %897 = vmatprep.subr.mxu0 0.0
    %898 = vmatpush1.msra.mxu0 0.0
    %899 = vmatprep.subr.mxu0 0.0
    %900 = vmatpush1.msra.mxu0 0.0
    %901 = vmatprep.mubr.f32.mxu0 0.0
    %902 = vmatmul.mubr.f32.gmra.mrb[0].mxu0 %v835
    %v903 = vpop.f32.mrb[0].mxu0
    %v904 = vadd.f32 %v227, %v903
    %v905 = vpop.f32.mrb[0].mxu0
    %906 = vdwg.mxu0
    %v907 = vadd.f32 %v214, %v904
    %v908 = vxor.u32 %v907, 2147483648
    %v909 = vmul.f32 %v908, 1.442695
    %v910 = vpow.pop %v909
    %v911 = vadd.f32 %v910, 1.0
    %v912 = vrcp.pop %v911
    %v913 = vmul.f32 1.0, %v912
    %915 = vrot.lane.b32.xlu0 %v904, 96
    %v916 = vpop.permute.xlu0 %915
    %v918 = vmul.f32 %v913, %v916
    %920 = vrot.lane.b32.xlu0 %v918, 32
    %v921 = vpop.permute.xlu0 %920
    %v923 = vadd.f32 %v214, %v921
    %v924 = vtanh.pop %v923
    %v925 = vsub.f32 1.0, %v913
    %927 = vrot.lane.b32.xlu0 %v924, 112
    %v928 = vpop.permute.xlu0 %927
    %v930 = vmul.f32 %v925, %v928
    %931 = vrot.lane.b32.xlu0 %v833, 16
    %v932 = vpop.permute.xlu0 %931
    %v934 = vmul.f32 %v913, %v932
    %v935 = vadd.f32 %v930, %v934
    %v936 = vrot.slane %v904, 2
    %v938 = vadd.f32 %v209, %v936
    %v939 = vxor.u32 %v938, 2147483648
    %v940 = vmul.f32 %v939, 1.442695
    %v941 = vpow.pop %v940
    %v942 = vadd.f32 %v941, 1.0
    %v943 = vrcp.pop %v942
    %v944 = vmul.f32 1.0, %v943
    %945 = vrot.lane.b32.xlu0 %v936, 96
    %v946 = vpop.permute.xlu0 %945
    %v948 = vmul.f32 %v944, %v946
    %950 = vrot.lane.b32.xlu0 %v948, 32
    %v951 = vpop.permute.xlu0 %950
    %v953 = vadd.f32 %v209, %v951
    %v954 = vtanh.pop %v953
    %v955 = vsub.f32 1.0, %v944
    %957 = vrot.lane.b32.xlu0 %v954, 112
    %v958 = vpop.permute.xlu0 %957
    %v960 = vmul.f32 %v955, %v958
    %v961 = vrot.slane %v833, 2
    %962 = vrot.lane.b32.xlu0 %v961, 48
    %v963 = vpop.permute.xlu0 %962
    %v965 = vmul.f32 %v944, %v963
    %v966 = vadd.f32 %v960, %v965
    %968 = vrot.lane.b32.xlu0 %v935, 112
    %v969 = vpop.permute.xlu0 %968
    %971 = vst.msk [vmem:[#allocation3] sm:$0x3] %vm366, %v969
    %973 = vrot.lane.b32.xlu0 %v966, 80
    %v974 = vpop.permute.xlu0 %973
    %976 = vst.msk [vmem:[#allocation3 - $0x6] sm:$0xc0] %vm372, %v974
    %977 = vst.msk [vmem:[%s831] sm:$0x3] %vm366, %v969
    %978 = vst.msk [vmem:[%s829 - $0x6] sm:$0xc0] %vm372, %v974
    %v979 = vld [vmem:[#allocation3] sm:$0x3]
    %v981 = vsel %vm135, %v979, 0
    %983 = vmatprep.subr.mxu0 0.0
    %984 = vmatpush1.msra.mxu0 %v217
    %985 = vmatprep.subr.mxu0 0.0
    %986 = vmatpush1.msra.mxu0 %v218
    %987 = vmatprep.subr.mxu0 0.0
    %988 = vmatpush1.msra.mxu0 %v219
    %989 = vmatprep.subr.mxu0 0.0
    %990 = vmatpush1.msra.mxu0 %v220
    %991 = vmatprep.subr.mxu0 0.0
    %992 = vmatpush1.msra.mxu0 0.0
    %993 = vmatprep.subr.mxu0 0.0
    %994 = vmatpush1.msra.mxu0 0.0
    %995 = vmatprep.subr.mxu0 0.0
    %996 = vmatpush1.msra.mxu0 0.0
    %997 = vmatprep.subr.mxu0 0.0
    %998 = vmatpush1.msra.mxu0 0.0
    %999 = vmatprep.subr.mxu0 0.0
    %1000 = vmatpush1.msra.mxu0 0.0
    %1001 = vmatprep.subr.mxu0 0.0
    %1002 = vmatpush1.msra.mxu0 0.0
    %1003 = vmatprep.subr.mxu0 0.0
    %1004 = vmatpush1.msra.mxu0 0.0
    %1005 = vmatprep.subr.mxu0 0.0
    %1006 = vmatpush1.msra.mxu0 0.0
    %1007 = vmatprep.subr.mxu0 0.0
    %1008 = vmatpush1.msra.mxu0 0.0
    %1009 = vmatprep.subr.mxu0 0.0
    %1010 = vmatpush1.msra.mxu0 0.0
    %1011 = vmatprep.subr.mxu0 0.0
    %1012 = vmatpush1.msra.mxu0 0.0
    %1013 = vmatprep.subr.mxu0 0.0
    %1014 = vmatpush1.msra.mxu0 0.0
    %1015 = vmatprep.subr.mxu0 0.0
    %1016 = vmatpush1.msra.mxu0 0.0
    %1017 = vmatprep.subr.mxu0 0.0
    %1018 = vmatpush1.msra.mxu0 0.0
    %1019 = vmatprep.subr.mxu0 0.0
    %1020 = vmatpush1.msra.mxu0 0.0
    %1021 = vmatprep.subr.mxu0 0.0
    %1022 = vmatpush1.msra.mxu0 0.0
    %1023 = vmatprep.subr.mxu0 0.0
    %1024 = vmatpush1.msra.mxu0 0.0
    %1025 = vmatprep.subr.mxu0 0.0
    %1026 = vmatpush1.msra.mxu0 0.0
    %1027 = vmatprep.subr.mxu0 0.0
    %1028 = vmatpush1.msra.mxu0 0.0
    %1029 = vmatprep.subr.mxu0 0.0
    %1030 = vmatpush1.msra.mxu0 0.0
    %1031 = vmatprep.subr.mxu0 0.0
    %1032 = vmatpush1.msra.mxu0 0.0
    %1033 = vmatprep.subr.mxu0 0.0
    %1034 = vmatpush1.msra.mxu0 0.0
    %1035 = vmatprep.subr.mxu0 0.0
    %1036 = vmatpush1.msra.mxu0 0.0
    %1037 = vmatprep.subr.mxu0 0.0
    %1038 = vmatpush1.msra.mxu0 0.0
    %1039 = vmatprep.subr.mxu0 0.0
    %1040 = vmatpush1.msra.mxu0 0.0
    %1041 = vmatprep.subr.mxu0 0.0
    %1042 = vmatpush1.msra.mxu0 0.0
    %1043 = vmatprep.subr.mxu0 0.0
    %1044 = vmatpush1.msra.mxu0 0.0
    %1045 = vmatprep.subr.mxu0 0.0
    %1046 = vmatpush1.msra.mxu0 0.0
    %1047 = vmatprep.mubr.f32.mxu0 0.0
    %1048 = vmatmul.mubr.f32.gmra.mrb[0].mxu0 %v981
    %v1049 = vpop.f32.mrb[0].mxu0
    %v1050 = vadd.f32 %v227, %v1049
    %v1051 = vpop.f32.mrb[0].mxu0
    %1052 = vdwg.mxu0
    %v1054 = vrot.slane %v1050, 6
    %v1056 = vadd.f32 %v214, %v1054
    %v1057 = vxor.u32 %v1056, 2147483648
    %v1058 = vmul.f32 %v1057, 1.442695
    %v1059 = vpow.pop %v1058
    %v1060 = vadd.f32 %v1059, 1.0
    %v1061 = vrcp.pop %v1060
    %v1062 = vmul.f32 1.0, %v1061
    %1063 = vrot.lane.b32.xlu0 %v1054, 96
    %v1064 = vpop.permute.xlu0 %1063
    %v1066 = vmul.f32 %v1062, %v1064
    %1068 = vrot.lane.b32.xlu0 %v1066, 32
    %v1069 = vpop.permute.xlu0 %1068
    %v1071 = vadd.f32 %v214, %v1069
    %v1072 = vtanh.pop %v1071
    %v1073 = vsub.f32 1.0, %v1062
    %1075 = vrot.lane.b32.xlu0 %v1072, 112
    %v1076 = vpop.permute.xlu0 %1075
    %v1078 = vmul.f32 %v1073, %v1076
    %v1079 = vrot.slane %v979, 6
    %1080 = vrot.lane.b32.xlu0 %v1079, 16
    %v1081 = vpop.permute.xlu0 %1080
    %v1083 = vmul.f32 %v1062, %v1081
    %v1084 = vadd.f32 %v1078, %v1083
    %v1085 = vrot.slane %v1050, 4
    %v1087 = vadd.f32 %v209, %v1085
    %v1088 = vxor.u32 %v1087, 2147483648
    %v1089 = vmul.f32 %v1088, 1.442695
    %v1090 = vpow.pop %v1089
    %v1091 = vadd.f32 %v1090, 1.0
    %v1092 = vrcp.pop %v1091
    %v1093 = vmul.f32 1.0, %v1092
    %1094 = vrot.lane.b32.xlu0 %v1085, 96
    %v1095 = vpop.permute.xlu0 %1094
    %v1097 = vmul.f32 %v1093, %v1095
    %1099 = vrot.lane.b32.xlu0 %v1097, 32
    %v1100 = vpop.permute.xlu0 %1099
    %v1102 = vadd.f32 %v209, %v1100
    %v1103 = vtanh.pop %v1102
    %v1104 = vsub.f32 1.0, %v1093
    %1106 = vrot.lane.b32.xlu0 %v1103, 112
    %v1107 = vpop.permute.xlu0 %1106
    %v1109 = vmul.f32 %v1104, %v1107
    %v1110 = vrot.slane %v979, 4
    %1111 = vrot.lane.b32.xlu0 %v1110, 48
    %v1112 = vpop.permute.xlu0 %1111
    %v1114 = vmul.f32 %v1093, %v1112
    %v1115 = vadd.f32 %v1109, %v1114
    %1117 = vrot.lane.b32.xlu0 %v1084, 112
    %v1118 = vpop.permute.xlu0 %1117
    %1120 = vst.msk [vmem:[#allocation3 - $0x2] sm:$0xc] %vm518, %v1118
    %1122 = vrot.lane.b32.xlu0 %v1115, 80
    %v1123 = vpop.permute.xlu0 %1122
    %1125 = vst.msk [vmem:[#allocation3 - $0x4] sm:$0x30] %vm524, %v1123
    %1126 = vst.msk [vmem:[%s681 - $0x2] sm:$0xc] %vm518, %v1118
    %1127 = vst.msk [vmem:[%s679 - $0x4] sm:$0x30] %vm524, %v1123
    %v1128 = vld [vmem:[#allocation3] sm:$0x3]
    %v1130 = vsel %vm135, %v1128, 0
    %1132 = vmatprep.subr.mxu0 0.0
    %1133 = vmatpush1.msra.mxu0 %v217
    %1134 = vmatprep.subr.mxu0 0.0
    %1135 = vmatpush1.msra.mxu0 %v218
    %1136 = vmatprep.subr.mxu0 0.0
    %1137 = vmatpush1.msra.mxu0 %v219
    %1138 = vmatprep.subr.mxu0 0.0
    %1139 = vmatpush1.msra.mxu0 %v220
    %1140 = vmatprep.subr.mxu0 0.0
    %1141 = vmatpush1.msra.mxu0 0.0
    %1142 = vmatprep.subr.mxu0 0.0
    %1143 = vmatpush1.msra.mxu0 0.0
    %1144 = vmatprep.subr.mxu0 0.0
    %1145 = vmatpush1.msra.mxu0 0.0
    %1146 = vmatprep.subr.mxu0 0.0
    %1147 = vmatpush1.msra.mxu0 0.0
    %1148 = vmatprep.subr.mxu0 0.0
    %1149 = vmatpush1.msra.mxu0 0.0
    %1150 = vmatprep.subr.mxu0 0.0
    %1151 = vmatpush1.msra.mxu0 0.0
    %1152 = vmatprep.subr.mxu0 0.0
    %1153 = vmatpush1.msra.mxu0 0.0
    %1154 = vmatprep.subr.mxu0 0.0
    %1155 = vmatpush1.msra.mxu0 0.0
    %1156 = vmatprep.subr.mxu0 0.0
    %1157 = vmatpush1.msra.mxu0 0.0
    %1158 = vmatprep.subr.mxu0 0.0
    %1159 = vmatpush1.msra.mxu0 0.0
    %1160 = vmatprep.subr.mxu0 0.0
    %1161 = vmatpush1.msra.mxu0 0.0
    %1162 = vmatprep.subr.mxu0 0.0
    %1163 = vmatpush1.msra.mxu0 0.0
    %1164 = vmatprep.subr.mxu0 0.0
    %1165 = vmatpush1.msra.mxu0 0.0
    %1166 = vmatprep.subr.mxu0 0.0
    %1167 = vmatpush1.msra.mxu0 0.0
    %1168 = vmatprep.subr.mxu0 0.0
    %1169 = vmatpush1.msra.mxu0 0.0
    %1170 = vmatprep.subr.mxu0 0.0
    %1171 = vmatpush1.msra.mxu0 0.0
    %1172 = vmatprep.subr.mxu0 0.0
    %1173 = vmatpush1.msra.mxu0 0.0
    %1174 = vmatprep.subr.mxu0 0.0
    %1175 = vmatpush1.msra.mxu0 0.0
    %1176 = vmatprep.subr.mxu0 0.0
    %1177 = vmatpush1.msra.mxu0 0.0
    %1178 = vmatprep.subr.mxu0 0.0
    %1179 = vmatpush1.msra.mxu0 0.0
    %1180 = vmatprep.subr.mxu0 0.0
    %1181 = vmatpush1.msra.mxu0 0.0
    %1182 = vmatprep.subr.mxu0 0.0
    %1183 = vmatpush1.msra.mxu0 0.0
    %1184 = vmatprep.subr.mxu0 0.0
    %1185 = vmatpush1.msra.mxu0 0.0
    %1186 = vmatprep.subr.mxu0 0.0
    %1187 = vmatpush1.msra.mxu0 0.0
    %1188 = vmatprep.subr.mxu0 0.0
    %1189 = vmatpush1.msra.mxu0 0.0
    %1190 = vmatprep.subr.mxu0 0.0
    %1191 = vmatpush1.msra.mxu0 0.0
    %1192 = vmatprep.subr.mxu0 0.0
    %1193 = vmatpush1.msra.mxu0 0.0
    %1194 = vmatprep.subr.mxu0 0.0
    %1195 = vmatpush1.msra.mxu0 0.0
    %1196 = vmatprep.mubr.f32.mxu0 0.0
    %1197 = vmatmul.mubr.f32.gmra.mrb[0].mxu0 %v1130
    %v1198 = vpop.f32.mrb[0].mxu0
    %v1199 = vadd.f32 %v227, %v1198
    %v1200 = vpop.f32.mrb[0].mxu0
    %1201 = vdwg.mxu0
    %v1203 = vrot.slane %v1199, 4
    %v1205 = vadd.f32 %v214, %v1203
    %v1206 = vxor.u32 %v1205, 2147483648
    %v1207 = vmul.f32 %v1206, 1.442695
    %v1208 = vpow.pop %v1207
    %v1209 = vadd.f32 %v1208, 1.0
    %v1210 = vrcp.pop %v1209
    %v1211 = vmul.f32 1.0, %v1210
    %1212 = vrot.lane.b32.xlu0 %v1203, 96
    %v1213 = vpop.permute.xlu0 %1212
    %v1215 = vmul.f32 %v1211, %v1213
    %1217 = vrot.lane.b32.xlu0 %v1215, 32
    %v1218 = vpop.permute.xlu0 %1217
    %v1220 = vadd.f32 %v214, %v1218
    %v1221 = vtanh.pop %v1220
    %v1222 = vsub.f32 1.0, %v1211
    %1224 = vrot.lane.b32.xlu0 %v1221, 112
    %v1225 = vpop.permute.xlu0 %1224
    %v1227 = vmul.f32 %v1222, %v1225
    %v1228 = vrot.slane %v1128, 4
    %1229 = vrot.lane.b32.xlu0 %v1228, 16
    %v1230 = vpop.permute.xlu0 %1229
    %v1232 = vmul.f32 %v1211, %v1230
    %v1233 = vadd.f32 %v1227, %v1232
    %v1234 = vrot.slane %v1199, 6
    %v1236 = vadd.f32 %v209, %v1234
    %v1237 = vxor.u32 %v1236, 2147483648
    %v1238 = vmul.f32 %v1237, 1.442695
    %v1239 = vpow.pop %v1238
    %v1240 = vadd.f32 %v1239, 1.0
    %v1241 = vrcp.pop %v1240
    %v1242 = vmul.f32 1.0, %v1241
    %1243 = vrot.lane.b32.xlu0 %v1234, 96
    %v1244 = vpop.permute.xlu0 %1243
    %v1246 = vmul.f32 %v1242, %v1244
    %1248 = vrot.lane.b32.xlu0 %v1246, 32
    %v1249 = vpop.permute.xlu0 %1248
    %v1251 = vadd.f32 %v209, %v1249
    %v1252 = vtanh.pop %v1251
    %v1253 = vsub.f32 1.0, %v1242
    %1255 = vrot.lane.b32.xlu0 %v1252, 112
    %v1256 = vpop.permute.xlu0 %1255
    %v1258 = vmul.f32 %v1253, %v1256
    %v1259 = vrot.slane %v1128, 6
    %1260 = vrot.lane.b32.xlu0 %v1259, 48
    %v1261 = vpop.permute.xlu0 %1260
    %v1263 = vmul.f32 %v1242, %v1261
    %v1264 = vadd.f32 %v1258, %v1263
    %1266 = vrot.lane.b32.xlu0 %v1233, 112
    %v1267 = vpop.permute.xlu0 %1266
    %1269 = vst.msk [vmem:[#allocation3 - $0x4] sm:$0x30] %vm671, %v1267
    %1271 = vrot.lane.b32.xlu0 %v1264, 80
    %v1272 = vpop.permute.xlu0 %1271
    %1274 = vst.msk [vmem:[#allocation3 - $0x2] sm:$0xc] %vm677, %v1272
    %1275 = vst.msk [vmem:[%s528 - $0x4] sm:$0x30] %vm671, %v1267
    %1276 = vst.msk [vmem:[%s526 - $0x2] sm:$0xc] %vm677, %v1272
    %v1277 = vld [vmem:[#allocation3] sm:$0x3]
    %v1279 = vsel %vm135, %v1277, 0
    %1281 = vmatprep.subr.mxu0 0.0
    %1282 = vmatpush1.msra.mxu0 %v217
    %1283 = vmatprep.subr.mxu0 0.0
    %1284 = vmatpush1.msra.mxu0 %v218
    %1285 = vmatprep.subr.mxu0 0.0
    %1286 = vmatpush1.msra.mxu0 %v219
    %1287 = vmatprep.subr.mxu0 0.0
    %1288 = vmatpush1.msra.mxu0 %v220
    %1289 = vmatprep.subr.mxu0 0.0
    %1290 = vmatpush1.msra.mxu0 0.0
    %1291 = vmatprep.subr.mxu0 0.0
    %1292 = vmatpush1.msra.mxu0 0.0
    %1293 = vmatprep.subr.mxu0 0.0
    %1294 = vmatpush1.msra.mxu0 0.0
    %1295 = vmatprep.subr.mxu0 0.0
    %1296 = vmatpush1.msra.mxu0 0.0
    %1297 = vmatprep.subr.mxu0 0.0
    %1298 = vmatpush1.msra.mxu0 0.0
    %1299 = vmatprep.subr.mxu0 0.0
    %1300 = vmatpush1.msra.mxu0 0.0
    %1301 = vmatprep.subr.mxu0 0.0
    %1302 = vmatpush1.msra.mxu0 0.0
    %1303 = vmatprep.subr.mxu0 0.0
    %1304 = vmatpush1.msra.mxu0 0.0
    %1305 = vmatprep.subr.mxu0 0.0
    %1306 = vmatpush1.msra.mxu0 0.0
    %1307 = vmatprep.subr.mxu0 0.0
    %1308 = vmatpush1.msra.mxu0 0.0
    %1309 = vmatprep.subr.mxu0 0.0
    %1310 = vmatpush1.msra.mxu0 0.0
    %1311 = vmatprep.subr.mxu0 0.0
    %1312 = vmatpush1.msra.mxu0 0.0
    %1313 = vmatprep.subr.mxu0 0.0
    %1314 = vmatpush1.msra.mxu0 0.0
    %1315 = vmatprep.subr.mxu0 0.0
    %1316 = vmatpush1.msra.mxu0 0.0
    %1317 = vmatprep.subr.mxu0 0.0
    %1318 = vmatpush1.msra.mxu0 0.0
    %1319 = vmatprep.subr.mxu0 0.0
    %1320 = vmatpush1.msra.mxu0 0.0
    %1321 = vmatprep.subr.mxu0 0.0
    %1322 = vmatpush1.msra.mxu0 0.0
    %1323 = vmatprep.subr.mxu0 0.0
    %1324 = vmatpush1.msra.mxu0 0.0
    %1325 = vmatprep.subr.mxu0 0.0
    %1326 = vmatpush1.msra.mxu0 0.0
    %1327 = vmatprep.subr.mxu0 0.0
    %1328 = vmatpush1.msra.mxu0 0.0
    %1329 = vmatprep.subr.mxu0 0.0
    %1330 = vmatpush1.msra.mxu0 0.0
    %1331 = vmatprep.subr.mxu0 0.0
    %1332 = vmatpush1.msra.mxu0 0.0
    %1333 = vmatprep.subr.mxu0 0.0
    %1334 = vmatpush1.msra.mxu0 0.0
    %1335 = vmatprep.subr.mxu0 0.0
    %1336 = vmatpush1.msra.mxu0 0.0
    %1337 = vmatprep.subr.mxu0 0.0
    %1338 = vmatpush1.msra.mxu0 0.0
    %1339 = vmatprep.subr.mxu0 0.0
    %1340 = vmatpush1.msra.mxu0 0.0
    %1341 = vmatprep.subr.mxu0 0.0
    %1342 = vmatpush1.msra.mxu0 0.0
    %1343 = vmatprep.subr.mxu0 0.0
    %1344 = vmatpush1.msra.mxu0 0.0
    %1345 = vmatprep.mubr.f32.mxu0 0.0
    %1346 = vmatmul.mubr.f32.gmra.mrb[0].mxu0 %v1279
    %v1347 = vpop.f32.mrb[0].mxu0
    %v1348 = vadd.f32 %v227, %v1347
    %v1349 = vpop.f32.mrb[0].mxu0
    %1350 = vdwg.mxu0
    %v1352 = vrot.slane %v1348, 2
    %v1354 = vadd.f32 %v214, %v1352
    %v1355 = vxor.u32 %v1354, 2147483648
    %v1356 = vmul.f32 %v1355, 1.442695
    %v1357 = vpow.pop %v1356
    %v1358 = vadd.f32 %v1357, 1.0
    %v1359 = vrcp.pop %v1358
    %v1360 = vmul.f32 1.0, %v1359
    %1361 = vrot.lane.b32.xlu0 %v1352, 96
    %v1362 = vpop.permute.xlu0 %1361
    %v1364 = vmul.f32 %v1360, %v1362
    %1366 = vrot.lane.b32.xlu0 %v1364, 32
    %v1367 = vpop.permute.xlu0 %1366
    %v1369 = vadd.f32 %v214, %v1367
    %v1370 = vtanh.pop %v1369
    %v1371 = vsub.f32 1.0, %v1360
    %1373 = vrot.lane.b32.xlu0 %v1370, 112
    %v1374 = vpop.permute.xlu0 %1373
    %v1376 = vmul.f32 %v1371, %v1374
    %v1377 = vrot.slane %v1277, 2
    %1378 = vrot.lane.b32.xlu0 %v1377, 16
    %v1379 = vpop.permute.xlu0 %1378
    %v1381 = vmul.f32 %v1360, %v1379
    %v1382 = vadd.f32 %v1376, %v1381
    %v1383 = vadd.f32 %v209, %v1348
    %v1384 = vxor.u32 %v1383, 2147483648
    %v1385 = vmul.f32 %v1384, 1.442695
    %v1386 = vpow.pop %v1385
    %v1387 = vadd.f32 %v1386, 1.0
    %v1388 = vrcp.pop %v1387
    %v1389 = vmul.f32 1.0, %v1388
    %1390 = vrot.lane.b32.xlu0 %v1348, 96
    %v1391 = vpop.permute.xlu0 %1390
    %v1393 = vmul.f32 %v1389, %v1391
    %1395 = vrot.lane.b32.xlu0 %v1393, 32
    %v1396 = vpop.permute.xlu0 %1395
    %v1398 = vadd.f32 %v209, %v1396
    %v1399 = vtanh.pop %v1398
    %v1400 = vsub.f32 1.0, %v1389
    %1402 = vrot.lane.b32.xlu0 %v1399, 112
    %v1403 = vpop.permute.xlu0 %1402
    %v1405 = vmul.f32 %v1400, %v1403
    %1406 = vrot.lane.b32.xlu0 %v1277, 48
    %v1407 = vpop.permute.xlu0 %1406
    %v1409 = vmul.f32 %v1389, %v1407
    %v1410 = vadd.f32 %v1405, %v1409
    %1412 = vrot.lane.b32.xlu0 %v1382, 112
    %v1413 = vpop.permute.xlu0 %1412
    %1415 = vst.msk [vmem:[#allocation3 - $0x6] sm:$0xc0] %vm821, %v1413
    %1417 = vrot.lane.b32.xlu0 %v1410, 80
    %v1418 = vpop.permute.xlu0 %1417
    %1420 = vst.msk [vmem:[#allocation3] sm:$0x3] %vm827, %v1418
    %1421 = vst.msk [vmem:[%s375 - $0x6] sm:$0xc0] %vm821, %v1413
    %1422 = vst.msk [vmem:[#allocation6] sm:$0x3] %vm827, %v1418
    // Predicated region
    $region34: #{tpu_custom_call.1} parent=1 // pred_check
      %p1423 = pneg %p35
    $region35: #{tpu_custom_call.1} parent=1 // pred_check_branch
      %1425 = sbr.rel (%p1423) target = $region37
    $region36: #{tpu_custom_call.1} parent=1 // pred_region
      %v1426 = vld [vmem:[#allocation3] sm:$0x3]
      %v1427 = vld [vmem:[%s6] sm:$0xff]
      %v1428 = vld [vmem:[%s6 + $0x8] sm:$0xff]
      %v1429 = vld [vmem:[%s6 + $0x10] sm:$0xff]
      %v1430 = vld [vmem:[%s6 + $0x18] sm:$0xff]
      %v1431 = vld [vmem:[%s7] sm:$0x1]
      %v1433 = vlaneseq
      %v1434 = vshrl.u32 %v1433, 7
      %v1435 = vsub.s32 0, %v1434
      %v1436 = vrot.slane %v1431, %v1435
      %v1439 = vsel %vm135, %v1426, 0
      %1441 = vmatprep.subr.mxu0 0.0
      %1442 = vmatpush1.msra.mxu0 %v1427
      %1443 = vmatprep.subr.mxu0 0.0
      %1444 = vmatpush1.msra.mxu0 %v1428
      %1445 = vmatprep.subr.mxu0 0.0
      %1446 = vmatpush1.msra.mxu0 %v1429
      %1447 = vmatprep.subr.mxu0 0.0
      %1448 = vmatpush1.msra.mxu0 %v1430
      %1449 = vmatprep.subr.mxu0 0.0
      %1450 = vmatpush1.msra.mxu0 0.0
      %1451 = vmatprep.subr.mxu0 0.0
      %1452 = vmatpush1.msra.mxu0 0.0
      %1453 = vmatprep.subr.mxu0 0.0
      %1454 = vmatpush1.msra.mxu0 0.0
      %1455 = vmatprep.subr.mxu0 0.0
      %1456 = vmatpush1.msra.mxu0 0.0
      %1457 = vmatprep.subr.mxu0 0.0
      %1458 = vmatpush1.msra.mxu0 0.0
      %1459 = vmatprep.subr.mxu0 0.0
      %1460 = vmatpush1.msra.mxu0 0.0
      %1461 = vmatprep.subr.mxu0 0.0
      %1462 = vmatpush1.msra.mxu0 0.0
      %1463 = vmatprep.subr.mxu0 0.0
      %1464 = vmatpush1.msra.mxu0 0.0
      %1465 = vmatprep.subr.mxu0 0.0
      %1466 = vmatpush1.msra.mxu0 0.0
      %1467 = vmatprep.subr.mxu0 0.0
      %1468 = vmatpush1.msra.mxu0 0.0
      %1469 = vmatprep.subr.mxu0 0.0
      %1470 = vmatpush1.msra.mxu0 0.0
      %1471 = vmatprep.subr.mxu0 0.0
      %1472 = vmatpush1.msra.mxu0 0.0
      %1473 = vmatprep.subr.mxu0 0.0
      %1474 = vmatpush1.msra.mxu0 0.0
      %1475 = vmatprep.subr.mxu0 0.0
      %1476 = vmatpush1.msra.mxu0 0.0
      %1477 = vmatprep.subr.mxu0 0.0
      %1478 = vmatpush1.msra.mxu0 0.0
      %1479 = vmatprep.subr.mxu0 0.0
      %1480 = vmatpush1.msra.mxu0 0.0
      %1481 = vmatprep.subr.mxu0 0.0
      %1482 = vmatpush1.msra.mxu0 0.0
      %1483 = vmatprep.subr.mxu0 0.0
      %1484 = vmatpush1.msra.mxu0 0.0
      %1485 = vmatprep.subr.mxu0 0.0
      %1486 = vmatpush1.msra.mxu0 0.0
      %1487 = vmatprep.subr.mxu0 0.0
      %1488 = vmatpush1.msra.mxu0 0.0
      %1489 = vmatprep.subr.mxu0 0.0
      %1490 = vmatpush1.msra.mxu0 0.0
      %1491 = vmatprep.subr.mxu0 0.0
      %1492 = vmatpush1.msra.mxu0 0.0
      %1493 = vmatprep.subr.mxu0 0.0
      %1494 = vmatpush1.msra.mxu0 0.0
      %1495 = vmatprep.subr.mxu0 0.0
      %1496 = vmatpush1.msra.mxu0 0.0
      %1497 = vmatprep.subr.mxu0 0.0
      %1498 = vmatpush1.msra.mxu0 0.0
      %1499 = vmatprep.subr.mxu0 0.0
      %1500 = vmatpush1.msra.mxu0 0.0
      %1501 = vmatprep.subr.mxu0 0.0
      %1502 = vmatpush1.msra.mxu0 0.0
      %1503 = vmatprep.subr.mxu0 0.0
      %1504 = vmatpush1.msra.mxu0 0.0
      %1505 = vmatprep.mubr.f32.mxu0 0.0
      %1506 = vmatmul.mubr.f32.gmra.mrb[0].mxu0 %v1439
      %v1507 = vpop.f32.mrb[0].mxu0
      %v1508 = vadd.f32 %v1436, %v1507
      %v1509 = vpop.f32.mrb[0].mxu0
      %1510 = vdwg.mxu0
      %v1511 = vtanh.pop %v1508
      %vm1512 = vcmask 254976
      %1513 = vst.msk [vmem:[#allocation8] sm:$0x3] %vm1512, %v1511
    $region37: #{tpu_custom_call.1} parent=1 // pred_fallthru
      _
    // Predicated region
    $region38: #{tpu_custom_call.1} parent=1 // pred_check
      _
    $region39: #{tpu_custom_call.1} parent=1 // pred_check_branch
      %1515 = sbr.rel (0) target = $region41
    $region40: #{tpu_custom_call.1} parent=1 // pred_region
      %s1517 = ssub.s32 256, 256
      %1518 = vsyncadd [#allocation7], %s1517
      %s1519 = sshll.u32 [#allocation6], 4
      %s1520 = int_to_ptr.vmem [resolvable:$true] %s1519
      %1525 = dma.vmem_to_hbm [thread:$0]  %s1520, 256, %s8, [#allocation7], 32, 32, 2
    $region41: #{tpu_custom_call.1} parent=1 // pred_fallthru
      _
    // Predicated region
    $region42: #{tpu_custom_call.1} parent=1 // pred_check
      _
    $region43: #{tpu_custom_call.1} parent=1 // pred_check_branch
      %1527 = sbr.rel (0) target = $region45
    $region44: #{tpu_custom_call.1} parent=1 // pred_region
      %s1529 = ssub.s32 32, 32
      %1530 = vsyncadd [#allocation9], %s1529
      %s1532 = sshll.u32 [#allocation8], 4
      %s1533 = int_to_ptr.vmem [resolvable:$true] %s1532
      %1535 = dma.vmem_to_hbm [thread:$0]  %s1533, 32, %s9, [#allocation9]
    $region45: #{tpu_custom_call.1} parent=1 // pred_fallthru
      _
    // Predicated region
    $region46: #{tpu_custom_call.1} parent=1 // pred_check
      _
    $region47: #{tpu_custom_call.1} parent=1 // pred_check_branch
      %1537 = sbr.rel (0) target = $region49
    $region48: #{tpu_custom_call.1} parent=1 // pred_region
      %1538 = dma.done [#allocation7], 256
    $region49: #{tpu_custom_call.1} parent=1 // pred_fallthru
      _
    // Predicated region
    $region50: #{tpu_custom_call.1} parent=1 // pred_check
      _
    $region51: #{tpu_custom_call.1} parent=1 // pred_check_branch
      %1540 = sbr.rel (0) target = $region53
    $region52: #{tpu_custom_call.1} parent=1 // pred_region
      %1541 = dma.done [#allocation9], 32
    $region53: #{tpu_custom_call.1} parent=1 // pred_fallthru
      _
    %1542 = vsyncpa [#allocation7], 1
    %1543 = vsyncpa [#allocation9], 1

</llo_original>
